<compile_context>
chip_gen: v5e
topology: v5e:2x2
jax: 0.10.0
libtpu: 0.0.40
codegen_flags: <defaults>
</compile_context>

<pallas_src>
import functools

import jax
import jax.numpy as jnp
from jax.experimental import pallas as pl
from jax.experimental.pallas import tpu as pltpu


def _dy_mixprop_kernel(x_ref, adj_ref, w1_ref, w2_ref, b_ref, o_ref, *, alpha):
    f32 = jnp.float32
    _, V, L, C = x_ref.shape
    gdep = w1_ref.shape[0] - 1

    x3 = x_ref[0]                      # (V, L, C)  -- channels on lanes
    adj = adj_ref[0]                   # (V, V)

    def prop(mat, h3, contract_lhs_rows):
        # graph propagation: contract the node axis of h3 against `mat`
        #   contract_lhs_rows=True :  out[w, ...] = sum_v mat[v, w] * h3[v, ...]
        #   contract_lhs_rows=False:  out[w, ...] = sum_v mat[w, v] * h3[v, ...]
        h2 = h3.reshape(V, L * C)
        lhs_c = (0,) if contract_lhs_rows else (1,)
        y = jax.lax.dot_general(mat, h2, ((lhs_c, (0,)), ((), ())),
                                preferred_element_type=f32)
        return y.reshape(V, L, C)

    def mix(h3, w_hop):
        # one hop's 1x1-conv contribution: (V*L, C) @ (C, c_out_pad), f32 accumulate
        return jnp.dot(h3.reshape(V * L, C), w_hop, preferred_element_type=f32)

    # hop 0 (h == x) feeds both branch MLPs -> fold the two hop-0 weight tiles together
    acc = mix(x3, w1_ref[0] + w2_ref[0])                 # (V*L, c_out_pad) f32

    # ---- branch 1: raw adjacency; dgconv(h, adj) contracts adj's first (row) axis ----
    h = x3
    for k in range(1, gdep + 1):
        h = alpha * x3 + (1.0 - alpha) * prop(adj, h, contract_lhs_rows=True)
        acc = acc + mix(h, w1_ref[k])

    # ---- branch 2: adj1 = softmax(adj^T, dim=-1); dgconv(h, adj1) is exactly a plain
    # matmul with the column-softmax of adj (derivation: adj1[v,w] = exp(adj[w,v])/D[v],
    # D[v] = sum_u exp(adj[u,v]))  -> no transpose needed in-kernel. -----------------
    col_max = jnp.max(adj, axis=0, keepdims=True)
    e = jnp.exp(adj - col_max)
    adj_soft = e / jnp.sum(e, axis=0, keepdims=True)     # column-stochastic (V, V)
    h = x3
    for k in range(1, gdep + 1):
        h = alpha * x3 + (1.0 - alpha) * prop(adj_soft, h, contract_lhs_rows=False)
        acc = acc + mix(h, w2_ref[k])

    # fused bias (b1 + b2) added once, single cast, lane-dense store
    o_ref[0] = (acc + b_ref[...]).astype(o_ref.dtype)


@functools.partial(jax.jit, static_argnames=("gdep", "alpha"))
def dy_mixprop_forward(x, adj, params, *, gdep, alpha):
    """Fused Pallas dy_mixprop. x: (N, C, V, L), adj: (N, V, V) -> (N, c_out, V, L)."""
    w1, b1, w2, b2 = params            # w: (c_out, (gdep+1)*C) (1x1 conv squeezed), b: (c_out,)
    N, C, V, L = x.shape
    c_out = w1.shape[0]
    assert adj.shape == (N, V, V)
    assert w1.shape == (c_out, (gdep + 1) * C) and w2.shape == w1.shape

    lane = 128
    c_out_p = ((c_out + lane - 1) // lane) * lane
    pad = c_out_p - c_out

    # ---- wrapper-side layout plumbing (cheap XLA ops, not kernel work) ---------------
    # x -> node-major (N, V, L, C): channels on lanes inside the kernel.
    x_k = jnp.transpose(x, (0, 2, 3, 1))
    # Conv 1x1 weight (c_out, (gdep+1)*C): pre-transpose, split per hop, pad lanes.
    def prep_w(w):
        w_t = jnp.transpose(w, (1, 0)).reshape(gdep + 1, C, c_out)   # [hop, c_in, c_out]
        return jnp.pad(w_t, ((0, 0), (0, 0), (0, pad)))
    w1_k, w2_k = prep_w(w1), prep_w(w2)
    # ho1 + ho2 only ever sees b1 + b2 -> one fused bias vector.
    b_k = jnp.pad((b1 + b2).reshape(1, c_out), ((0, 0), (0, pad)))

    kernel = functools.partial(_dy_mixprop_kernel, alpha=float(alpha))
    out = pl.pallas_call(
        kernel,
        out_shape=jax.ShapeDtypeStruct((N, V * L, c_out_p), x.dtype),
        grid=(N,),                                                     # one step per batch
        in_specs=[
            pl.BlockSpec((1, V, L, C), lambda n: (n, 0, 0, 0)),        # x[n]
            pl.BlockSpec((1, V, V), lambda n: (n, 0, 0)),              # adj[n]
            pl.BlockSpec((gdep + 1, C, c_out_p), lambda n: (0, 0, 0)), # W1 (VMEM-resident)
            pl.BlockSpec((gdep + 1, C, c_out_p), lambda n: (0, 0, 0)), # W2 (VMEM-resident)
            pl.BlockSpec((1, c_out_p), lambda n: (0, 0)),              # fused bias
        ],
        out_specs=pl.BlockSpec((1, V * L, c_out_p), lambda n: (n, 0, 0)),
        compiler_params=pltpu.CompilerParams(
            # batch axis is independent -> megacore/2-TC shardable on v7x
            dimension_semantics=("parallel",),
            # NOTE: for production shapes (V~200+, larger C/L, bf16 inputs) budget VMEM
            # against v7x's 64 MiB physical and set vmem_limit_bytes explicitly here.
        ),
    )(x_k, adj, w1_k, w2_k, b_k)

    # back to the PyTorch layout (N, c_out, V, L); drop lane padding.
    out = out[..., :c_out].reshape(N, V, L, c_out)
    return jnp.transpose(out, (0, 3, 1, 2))


def dy_mixprop_ref(x, adj, params, *, gdep, alpha):
    """Pure-JAX mirror of the PyTorch forward (correctness reference)."""
    w1, b1, w2, b2 = params

    def dgconv(h, a):
        return jnp.einsum('ncvl,nvw->ncwl', h, a)

    def conv1x1(h, w, b):
        return jnp.einsum('ncvl,oc->novl', h, w) + b[None, :, None, None]

    h, outs = x, [x]
    for _ in range(gdep):
        h = alpha * x + (1.0 - alpha) * dgconv(h, adj)
        outs.append(h)
    ho1 = conv1x1(jnp.concatenate(outs, axis=1), w1, b1)

    adj1 = jax.nn.softmax(jnp.transpose(adj, (0, 2, 1)), axis=2)
    h, outs = x, [x]
    for _ in range(gdep):
        h = alpha * x + (1.0 - alpha) * dgconv(h, adj1)
        outs.append(h)
    ho2 = conv1x1(jnp.concatenate(outs, axis=1), w2, b2)
    return ho1 + ho2


if __name__ == "__main__":
    # small shapes consistent with the module: batch=2, channels=16, nodes=16, seq=8
    N, C, V, L = 2, 16, 16, 8
    gdep, alpha, c_out = 2, 0.05, 32

    key = jax.random.PRNGKey(0)
    kx, ka, k1, k2, k3, k4 = jax.random.split(key, 6)
    x = jax.random.normal(kx, (N, C, V, L), jnp.float32)
    # dynamic adjacency (row-stochastic, as produced upstream in MTGNN/SNAS)
    adj = jax.nn.softmax(jax.random.normal(ka, (N, V, V), jnp.float32), axis=-1)

    cin_tot = (gdep + 1) * C
    bound = 1.0 / (cin_tot ** 0.5)
    w1 = jax.random.uniform(k1, (c_out, cin_tot), jnp.float32, -bound, bound)
    b1 = jax.random.uniform(k2, (c_out,), jnp.float32, -bound, bound)
    w2 = jax.random.uniform(k3, (c_out, cin_tot), jnp.float32, -bound, bound)
    b2 = jax.random.uniform(k4, (c_out,), jnp.float32, -bound, bound)
    params = (w1, b1, w2, b2)

    out = dy_mixprop_forward(x, adj, params, gdep=gdep, alpha=alpha)
    out = jax.block_until_ready(out)

    ref = dy_mixprop_ref(x, adj, params, gdep=gdep, alpha=alpha)
    assert out.shape == (N, c_out, V, L)
    err = float(jnp.max(jnp.abs(out - ref)))
    assert jnp.allclose(out, ref, atol=1e-4, rtol=1e-4), f"max |err| = {err}"

    print("KERNEL_OK")
</pallas_src>

<mosaic_0001>
module attributes {stable_mosaic.version = 11 : i64} {
  func.func @_dy_mixprop_kernel(%arg0: i32, %arg1: memref<1x16x8x16xf32, #tpu.memory_space<vmem>>, %arg2: memref<1x16x16xf32, #tpu.memory_space<vmem>>, %arg3: memref<3x16x128xf32, #tpu.memory_space<vmem>>, %arg4: memref<3x16x128xf32, #tpu.memory_space<vmem>>, %arg5: memref<1x128xf32, #tpu.memory_space<vmem>>, %arg6: memref<1x128x128xf32, #tpu.memory_space<vmem>>) attributes {dimension_semantics = [#tpu.dimension_semantics<parallel>], iteration_bounds = array<i64: 2>, scalar_prefetch = 0 : i64, scratch_operands = 0 : i64, tpu.core_type = #tpu.core_type<tc>, window_params = [{transform_indices = @transform_0, window_bounds = array<i64: 1, 16, 8, 16>}, {transform_indices = @transform_1, window_bounds = array<i64: 1, 16, 16>}, {pipeline_mode = #tpu.pipeline_mode<synchronous>, transform_indices = @transform_2, window_bounds = array<i64: 3, 16, 128>}, {pipeline_mode = #tpu.pipeline_mode<synchronous>, transform_indices = @transform_3, window_bounds = array<i64: 3, 16, 128>}, {pipeline_mode = #tpu.pipeline_mode<synchronous>, transform_indices = @transform_4, window_bounds = array<i64: 1, 128>}, {transform_indices = @transform_5, window_bounds = array<i64: 1, 128, 128>}]} {
    %c0 = arith.constant 0 : index
    %c0_0 = arith.constant 0 : index
    %c0_1 = arith.constant 0 : index
    %c0_2 = arith.constant 0 : index
    %0 = vector.load %arg1[%c0, %c0_0, %c0_1, %c0_2] : memref<1x16x8x16xf32, #tpu.memory_space<vmem>>, vector<1x16x8x16xf32>
    %1 = vector.shape_cast %0 : vector<1x16x8x16xf32> to vector<16x8x16xf32>
    %c0_3 = arith.constant 0 : index
    %c0_4 = arith.constant 0 : index
    %c0_5 = arith.constant 0 : index
    %2 = vector.load %arg2[%c0_3, %c0_4, %c0_5] : memref<1x16x16xf32, #tpu.memory_space<vmem>>, vector<1x16x16xf32>
    %3 = vector.shape_cast %2 : vector<1x16x16xf32> to vector<16x16xf32>
    %c0_6 = arith.constant 0 : index
    %c0_7 = arith.constant 0 : index
    %c0_8 = arith.constant 0 : index
    %4 = vector.load %arg3[%c0_6, %c0_7, %c0_8] : memref<3x16x128xf32, #tpu.memory_space<vmem>>, vector<1x16x128xf32>
    %5 = vector.shape_cast %4 : vector<1x16x128xf32> to vector<16x128xf32>
    %c0_9 = arith.constant 0 : index
    %c0_10 = arith.constant 0 : index
    %c0_11 = arith.constant 0 : index
    %6 = vector.load %arg4[%c0_9, %c0_10, %c0_11] : memref<3x16x128xf32, #tpu.memory_space<vmem>>, vector<1x16x128xf32>
    %7 = vector.shape_cast %6 : vector<1x16x128xf32> to vector<16x128xf32>
    %8 = arith.addf %5, %7 : vector<16x128xf32>
    %9 = vector.shape_cast %1 : vector<16x8x16xf32> to vector<128x16xf32>
    %cst = arith.constant dense<0.000000e+00> : vector<128x128xf32>
    %10 = tpu.matmul %9, %8, %cst {dimension_numbers = #tpu.dot_dimension_numbers<[1], [0], [0], [1], [0, 0, 1, 1], [], []>} : vector<128x16xf32>, vector<16x128xf32>, vector<128x128xf32> -> vector<128x128xf32>
    %cst_12 = arith.constant 5.000000e-02 : f32
    %11 = vector.broadcast %cst_12 : f32 to vector<16x8x16xf32>
    %12 = arith.mulf %11, %1 : vector<16x8x16xf32>
    %13 = vector.shape_cast %1 : vector<16x8x16xf32> to vector<16x128xf32>
    %cst_13 = arith.constant dense<0.000000e+00> : vector<16x128xf32>
    %14 = tpu.matmul %3, %13, %cst_13 {dimension_numbers = #tpu.dot_dimension_numbers<[0], [0], [1], [1], [0, 1, 1, 1], [], []>} : vector<16x16xf32>, vector<16x128xf32>, vector<16x128xf32> -> vector<16x128xf32>
    %15 = vector.shape_cast %14 : vector<16x128xf32> to vector<16x8x16xf32>
    %cst_14 = arith.constant 0.949999988 : f32
    %16 = vector.broadcast %cst_14 : f32 to vector<16x8x16xf32>
    %17 = arith.mulf %16, %15 : vector<16x8x16xf32>
    %18 = arith.addf %12, %17 : vector<16x8x16xf32>
    %c1 = arith.constant 1 : index
    %c0_15 = arith.constant 0 : index
    %c0_16 = arith.constant 0 : index
    %19 = vector.load %arg3[%c1, %c0_15, %c0_16] : memref<3x16x128xf32, #tpu.memory_space<vmem>>, vector<1x16x128xf32>
    %20 = vector.shape_cast %19 : vector<1x16x128xf32> to vector<16x128xf32>
    %21 = vector.shape_cast %18 : vector<16x8x16xf32> to vector<128x16xf32>
    %cst_17 = arith.constant dense<0.000000e+00> : vector<128x128xf32>
    %22 = tpu.matmul %21, %20, %cst_17 {dimension_numbers = #tpu.dot_dimension_numbers<[1], [0], [0], [1], [0, 0, 1, 1], [], []>} : vector<128x16xf32>, vector<16x128xf32>, vector<128x128xf32> -> vector<128x128xf32>
    %23 = arith.addf %10, %22 : vector<128x128xf32>
    %cst_18 = arith.constant 5.000000e-02 : f32
    %24 = vector.broadcast %cst_18 : f32 to vector<16x8x16xf32>
    %25 = arith.mulf %24, %1 : vector<16x8x16xf32>
    %26 = vector.shape_cast %18 : vector<16x8x16xf32> to vector<16x128xf32>
    %cst_19 = arith.constant dense<0.000000e+00> : vector<16x128xf32>
    %27 = tpu.matmul %3, %26, %cst_19 {dimension_numbers = #tpu.dot_dimension_numbers<[0], [0], [1], [1], [0, 1, 1, 1], [], []>} : vector<16x16xf32>, vector<16x128xf32>, vector<16x128xf32> -> vector<16x128xf32>
    %28 = vector.shape_cast %27 : vector<16x128xf32> to vector<16x8x16xf32>
    %cst_20 = arith.constant 0.949999988 : f32
    %29 = vector.broadcast %cst_20 : f32 to vector<16x8x16xf32>
    %30 = arith.mulf %29, %28 : vector<16x8x16xf32>
    %31 = arith.addf %25, %30 : vector<16x8x16xf32>
    %c2 = arith.constant 2 : index
    %c0_21 = arith.constant 0 : index
    %c0_22 = arith.constant 0 : index
    %32 = vector.load %arg3[%c2, %c0_21, %c0_22] : memref<3x16x128xf32, #tpu.memory_space<vmem>>, vector<1x16x128xf32>
    %33 = vector.shape_cast %32 : vector<1x16x128xf32> to vector<16x128xf32>
    %34 = vector.shape_cast %31 : vector<16x8x16xf32> to vector<128x16xf32>
    %cst_23 = arith.constant dense<0.000000e+00> : vector<128x128xf32>
    %35 = tpu.matmul %34, %33, %cst_23 {dimension_numbers = #tpu.dot_dimension_numbers<[1], [0], [0], [1], [0, 0, 1, 1], [], []>} : vector<128x16xf32>, vector<16x128xf32>, vector<128x128xf32> -> vector<128x128xf32>
    %36 = arith.addf %23, %35 : vector<128x128xf32>
    %cst_24 = arith.constant dense<0xFF800000> : vector<16xf32>
    %37 = vector.multi_reduction <maximumf>, %3, %cst_24 [0] : vector<16x16xf32> to vector<16xf32>
    %38 = vector.shape_cast %37 : vector<16xf32> to vector<1x16xf32>
    %39 = vector.broadcast %38 : vector<1x16xf32> to vector<16x16xf32>
    %40 = arith.subf %3, %39 : vector<16x16xf32>
    %41 = math.exp %40 : vector<16x16xf32>
    %cst_25 = arith.constant dense<0.000000e+00> : vector<16xf32>
    %42 = vector.multi_reduction <add>, %41, %cst_25 [0] : vector<16x16xf32> to vector<16xf32>
    %43 = vector.shape_cast %42 : vector<16xf32> to vector<1x16xf32>
    %44 = vector.broadcast %43 : vector<1x16xf32> to vector<16x16xf32>
    %45 = arith.divf %41, %44 : vector<16x16xf32>
    %cst_26 = arith.constant 5.000000e-02 : f32
    %46 = vector.broadcast %cst_26 : f32 to vector<16x8x16xf32>
    %47 = arith.mulf %46, %1 : vector<16x8x16xf32>
    %48 = vector.shape_cast %1 : vector<16x8x16xf32> to vector<16x128xf32>
    %cst_27 = arith.constant dense<0.000000e+00> : vector<16x128xf32>
    %49 = tpu.matmul %45, %48, %cst_27 {dimension_numbers = #tpu.dot_dimension_numbers<[1], [0], [0], [1], [0, 0, 1, 1], [], []>} : vector<16x16xf32>, vector<16x128xf32>, vector<16x128xf32> -> vector<16x128xf32>
    %50 = vector.shape_cast %49 : vector<16x128xf32> to vector<16x8x16xf32>
    %cst_28 = arith.constant 0.949999988 : f32
    %51 = vector.broadcast %cst_28 : f32 to vector<16x8x16xf32>
    %52 = arith.mulf %51, %50 : vector<16x8x16xf32>
    %53 = arith.addf %47, %52 : vector<16x8x16xf32>
    %c1_29 = arith.constant 1 : index
    %c0_30 = arith.constant 0 : index
    %c0_31 = arith.constant 0 : index
    %54 = vector.load %arg4[%c1_29, %c0_30, %c0_31] : memref<3x16x128xf32, #tpu.memory_space<vmem>>, vector<1x16x128xf32>
    %55 = vector.shape_cast %54 : vector<1x16x128xf32> to vector<16x128xf32>
    %56 = vector.shape_cast %53 : vector<16x8x16xf32> to vector<128x16xf32>
    %cst_32 = arith.constant dense<0.000000e+00> : vector<128x128xf32>
    %57 = tpu.matmul %56, %55, %cst_32 {dimension_numbers = #tpu.dot_dimension_numbers<[1], [0], [0], [1], [0, 0, 1, 1], [], []>} : vector<128x16xf32>, vector<16x128xf32>, vector<128x128xf32> -> vector<128x128xf32>
    %58 = arith.addf %36, %57 : vector<128x128xf32>
    %cst_33 = arith.constant 5.000000e-02 : f32
    %59 = vector.broadcast %cst_33 : f32 to vector<16x8x16xf32>
    %60 = arith.mulf %59, %1 : vector<16x8x16xf32>
    %61 = vector.shape_cast %53 : vector<16x8x16xf32> to vector<16x128xf32>
    %cst_34 = arith.constant dense<0.000000e+00> : vector<16x128xf32>
    %62 = tpu.matmul %45, %61, %cst_34 {dimension_numbers = #tpu.dot_dimension_numbers<[1], [0], [0], [1], [0, 0, 1, 1], [], []>} : vector<16x16xf32>, vector<16x128xf32>, vector<16x128xf32> -> vector<16x128xf32>
    %63 = vector.shape_cast %62 : vector<16x128xf32> to vector<16x8x16xf32>
    %cst_35 = arith.constant 0.949999988 : f32
    %64 = vector.broadcast %cst_35 : f32 to vector<16x8x16xf32>
    %65 = arith.mulf %64, %63 : vector<16x8x16xf32>
    %66 = arith.addf %60, %65 : vector<16x8x16xf32>
    %c2_36 = arith.constant 2 : index
    %c0_37 = arith.constant 0 : index
    %c0_38 = arith.constant 0 : index
    %67 = vector.load %arg4[%c2_36, %c0_37, %c0_38] : memref<3x16x128xf32, #tpu.memory_space<vmem>>, vector<1x16x128xf32>
    %68 = vector.shape_cast %67 : vector<1x16x128xf32> to vector<16x128xf32>
    %69 = vector.shape_cast %66 : vector<16x8x16xf32> to vector<128x16xf32>
    %cst_39 = arith.constant dense<0.000000e+00> : vector<128x128xf32>
    %70 = tpu.matmul %69, %68, %cst_39 {dimension_numbers = #tpu.dot_dimension_numbers<[1], [0], [0], [1], [0, 0, 1, 1], [], []>} : vector<128x16xf32>, vector<16x128xf32>, vector<128x128xf32> -> vector<128x128xf32>
    %71 = arith.addf %58, %70 : vector<128x128xf32>
    %c0_40 = arith.constant 0 : index
    %c0_41 = arith.constant 0 : index
    %72 = vector.load %arg5[%c0_40, %c0_41] : memref<1x128xf32, #tpu.memory_space<vmem>>, vector<1x128xf32>
    %73 = vector.broadcast %72 : vector<1x128xf32> to vector<128x128xf32>
    %74 = arith.addf %71, %73 : vector<128x128xf32>
    %c0_42 = arith.constant 0 : index
    %c0_43 = arith.constant 0 : index
    %c0_44 = arith.constant 0 : index
    %75 = vector.load %arg6[%c0_42, %c0_43, %c0_44] : memref<1x128x128xf32, #tpu.memory_space<vmem>>, vector<1x128x128xf32>
    %76 = vector.shape_cast %75 : vector<1x128x128xf32> to vector<128x128xf32>
    %77 = vector.shape_cast %74 : vector<128x128xf32> to vector<1x128x128xf32>
    tpu.vector_store %arg6[%c0_42, %c0_43, %c0_44], %77 {strides = array<i32>} : memref<1x128x128xf32, #tpu.memory_space<vmem>>, vector<1x128x128xf32>,
    return
  }
  func.func @transform_0(%arg0: i32) -> (i32, i32, i32, i32) {
    %c0_i32 = arith.constant 0 : i32
    %c0_i32_0 = arith.constant 0 : i32
    %c0_i32_1 = arith.constant 0 : i32
    %c0_i32_2 = arith.constant 0 : i32
    return %arg0, %c0_i32, %c0_i32_0, %c0_i32_1 : i32, i32, i32, i32
  }
  func.func @transform_1(%arg0: i32) -> (i32, i32, i32) {
    %c0_i32 = arith.constant 0 : i32
    %c0_i32_0 = arith.constant 0 : i32
    %c0_i32_1 = arith.constant 0 : i32
    return %arg0, %c0_i32, %c0_i32_0 : i32, i32, i32
  }
  func.func @transform_2(%arg0: i32) -> (i32, i32, i32) {
    %c0_i32 = arith.constant 0 : i32
    %c0_i32_0 = arith.constant 0 : i32
    %c0_i32_1 = arith.constant 0 : i32
    %c0_i32_2 = arith.constant 0 : i32
    return %c0_i32, %c0_i32_0, %c0_i32_1 : i32, i32, i32
  }
  func.func @transform_3(%arg0: i32) -> (i32, i32, i32) {
    %c0_i32 = arith.constant 0 : i32
    %c0_i32_0 = arith.constant 0 : i32
    %c0_i32_1 = arith.constant 0 : i32
    %c0_i32_2 = arith.constant 0 : i32
    return %c0_i32, %c0_i32_0, %c0_i32_1 : i32, i32, i32
  }
  func.func @transform_4(%arg0: i32) -> (i32, i32) {
    %c0_i32 = arith.constant 0 : i32
    %c0_i32_0 = arith.constant 0 : i32
    %c0_i32_1 = arith.constant 0 : i32
    return %c0_i32, %c0_i32_0 : i32, i32
  }
  func.func @transform_5(%arg0: i32) -> (i32, i32, i32) {
    %c0_i32 = arith.constant 0 : i32
    %c0_i32_0 = arith.constant 0 : i32
    %c0_i32_1 = arith.constant 0 : i32
    return %arg0, %c0_i32, %c0_i32_0 : i32, i32, i32
  }
}

</mosaic_0001>

<llo_original>
// kernel: dy_mixprop_forward.1
$region0: #{dy_mixprop_forward.1}
  #allocation0 [shape = 'u32[]', space=smem, size = 0x4, offset = 0x4, fixed_abs, tag = 'smem constant byte address 0x4 - core index']
  #allocation1 [shape = 'u32[72,128]{1,0:T(1,128)}', space=vmem, size = 0x9000, scoped, tag = 'internal scratch']
  %s0 = inlined_call_operand.vmem [shape: f32[2,16,8,16], index: 0, kind: input, shape index: {}]
  %s1 = inlined_call_operand.vmem [shape: f32[2,16,16], index: 1, kind: input, shape index: {}]
  %s2 = inlined_call_operand.vmem [shape: f32[3,16,128], index: 2, kind: input, shape index: {}]
  %s3 = inlined_call_operand.vmem [shape: f32[3,16,128], index: 3, kind: input, shape index: {}]
  %s4 = inlined_call_operand.vmem [shape: f32[1,128], index: 4, kind: input, shape index: {}]
  %s5 = inlined_call_operand.vmem [shape: f32[2,128,128], index: 5, kind: output, shape index: {}]
  %s6 = sld [smem:[#allocation0]]
  $region53: #{dy_mixprop_forward.1} parent=0
    _
  %s8 = ssub.s32 1, %s6
  %s9 = scalar_select 0, %s8, %s6
  loop: start=0, step=1, limit=4
  $region2: #{dy_mixprop_forward.1} parent=0 // loop_pre_header
    _
  $region3: #{dy_mixprop_forward.1} parent=0 // loop_header
    %s11 = sphi 0, %s15
    %p12 = scmp.ge.s32.totalorder %s11, 4
    %s21 = sphi 0, %s23
    %s24 = sphi 0, %s21
    %s25 = sphi 0, %s24
    %s41 = sphi 0, %s25
    %s47 = sphi 0, %s49
    %s50 = sphi 0, %s47
    %s51 = sphi 0, %s50
    %s67 = sphi 0, %s51
    %s71 = sphi 0, %s71
    %s73 = sphi 0, %s71
    %s74 = sphi 0, %s73
    %s88 = sphi 0, %s74
    %s92 = sphi 0, %s92
    %s94 = sphi 0, %s92
    %s95 = sphi 0, %s94
    %s109 = sphi 0, %s95
    %s113 = sphi 0, %s113
    %s115 = sphi 0, %s113
    %s116 = sphi 0, %s115
    %s130 = sphi 0, %s116
    %s136 = sphi 0, %s138
    %s139 = sphi 0, %s136
    %s140 = sphi 0, %s139
    %s156 = sphi 0, %s140
  $region4: #{dy_mixprop_forward.1} parent=0 // loop_header_branch
    %14 = sbr.rel (%p12) target = $region8
  $region5: #{dy_mixprop_forward.1} parent=0 // loop_body
    %s16 = ssub.s32 %s11, 1
    %s17 = ssub.s32 %s11, 2
    %s18 = sadd.s32 %s11, 1
    %s19 = ssub.s32 %s11, %s18
    %p20 = scmp.eq.s32.totalorder %s19, 0
    %s22 = sadd.s32 %s21, 1
    %s23 = scalar_select %p20, %s21, %s22
    %p26 = pneg %p20
    %p27 = scmp.eq.s32.totalorder %s11, 1
    %p28 = por %p26, %p27
    %p29 = scmp.ne.s32.totalorder %s21, %s24
    %p30 = scmp.eq.s32.totalorder %s11, 0
    %p31 = por %p29, %p30
    %p32 = scmp.ne.s32.totalorder %s21, %s24
    %p33 = scmp.eq.s32.totalorder %s16, 1
    %p34 = por %p32, %p33
    %p35 = scmp.ne.s32.totalorder %s24, %s25
    %p36 = scmp.eq.s32.totalorder %s16, 0
    %p37 = por %p35, %p36
    %p38 = scmp.ne.s32.totalorder %s24, %s25
    %p39 = scmp.eq.s32.totalorder %s17, 1
    %p40 = por %p38, %p39
    %p42 = scmp.ne.s32.totalorder %s25, %s41
    %p43 = scmp.eq.s32.totalorder %s17, 0
    %p44 = por %p42, %p43
    %s45 = ssub.s32 %s11, %s18
    %p46 = scmp.eq.s32.totalorder %s45, 0
    %s48 = sadd.s32 %s47, 1
    %s49 = scalar_select %p46, %s47, %s48
    %p52 = pneg %p46
    %p53 = scmp.eq.s32.totalorder %s11, 1
    %p54 = por %p52, %p53
    %p55 = scmp.ne.s32.totalorder %s47, %s50
    %p56 = scmp.eq.s32.totalorder %s11, 0
    %p57 = por %p55, %p56
    %p58 = scmp.ne.s32.totalorder %s47, %s50
    %p59 = scmp.eq.s32.totalorder %s16, 1
    %p60 = por %p58, %p59
    %p61 = scmp.ne.s32.totalorder %s50, %s51
    %p62 = scmp.eq.s32.totalorder %s16, 0
    %p63 = por %p61, %p62
    %p64 = scmp.ne.s32.totalorder %s50, %s51
    %p65 = scmp.eq.s32.totalorder %s17, 1
    %p66 = por %p64, %p65
    %p68 = scmp.ne.s32.totalorder %s51, %s67
    %p69 = scmp.eq.s32.totalorder %s17, 0
    %p70 = por %p68, %p69
    %s72 = sadd.s32 %s71, 1
    %p75 = scmp.eq.s32.totalorder %s11, 1
    %p76 = scmp.ne.s32.totalorder %s71, %s73
    %p77 = scmp.eq.s32.totalorder %s11, 0
    %p78 = por %p76, %p77
    %p79 = scmp.ne.s32.totalorder %s71, %s73
    %p80 = scmp.eq.s32.totalorder %s16, 1
    %p81 = por %p79, %p80
    %p82 = scmp.ne.s32.totalorder %s73, %s74
    %p83 = scmp.eq.s32.totalorder %s16, 0
    %p84 = por %p82, %p83
    %p85 = scmp.ne.s32.totalorder %s73, %s74
    %p86 = scmp.eq.s32.totalorder %s17, 1
    %p87 = por %p85, %p86
    %p89 = scmp.ne.s32.totalorder %s74, %s88
    %p90 = scmp.eq.s32.totalorder %s17, 0
    %p91 = por %p89, %p90
    %s93 = sadd.s32 %s92, 1
    %p96 = scmp.eq.s32.totalorder %s11, 1
    %p97 = scmp.ne.s32.totalorder %s92, %s94
    %p98 = scmp.eq.s32.totalorder %s11, 0
    %p99 = por %p97, %p98
    %p100 = scmp.ne.s32.totalorder %s92, %s94
    %p101 = scmp.eq.s32.totalorder %s16, 1
    %p102 = por %p100, %p101
    %p103 = scmp.ne.s32.totalorder %s94, %s95
    %p104 = scmp.eq.s32.totalorder %s16, 0
    %p105 = por %p103, %p104
    %p106 = scmp.ne.s32.totalorder %s94, %s95
    %p107 = scmp.eq.s32.totalorder %s17, 1
    %p108 = por %p106, %p107
    %p110 = scmp.ne.s32.totalorder %s95, %s109
    %p111 = scmp.eq.s32.totalorder %s17, 0
    %p112 = por %p110, %p111
    %s114 = sadd.s32 %s113, 1
    %p117 = scmp.eq.s32.totalorder %s11, 1
    %p118 = scmp.ne.s32.totalorder %s113, %s115
    %p119 = scmp.eq.s32.totalorder %s11, 0
    %p120 = por %p118, %p119
    %p121 = scmp.ne.s32.totalorder %s113, %s115
    %p122 = scmp.eq.s32.totalorder %s16, 1
    %p123 = por %p121, %p122
    %p124 = scmp.ne.s32.totalorder %s115, %s116
    %p125 = scmp.eq.s32.totalorder %s16, 0
    %p126 = por %p124, %p125
    %p127 = scmp.ne.s32.totalorder %s115, %s116
    %p128 = scmp.eq.s32.totalorder %s17, 1
    %p129 = por %p127, %p128
    %p131 = scmp.ne.s32.totalorder %s116, %s130
    %p132 = scmp.eq.s32.totalorder %s17, 0
    %p133 = por %p131, %p132
    %s134 = ssub.s32 %s11, %s18
    %p135 = scmp.eq.s32.totalorder %s134, 0
    %s137 = sadd.s32 %s136, 1
    %s138 = scalar_select %p135, %s136, %s137
    %p141 = pneg %p135
    %p142 = scmp.eq.s32.totalorder %s11, 1
    %p143 = por %p141, %p142
    %p144 = scmp.ne.s32.totalorder %s136, %s139
    %p145 = scmp.eq.s32.totalorder %s11, 0
    %p146 = por %p144, %p145
    %p147 = scmp.ne.s32.totalorder %s136, %s139
    %p148 = scmp.eq.s32.totalorder %s16, 1
    %p149 = por %p147, %p148
    %p150 = scmp.ne.s32.totalorder %s139, %s140
    %p151 = scmp.eq.s32.totalorder %s16, 0
    %p152 = por %p150, %p151
    %p153 = scmp.ne.s32.totalorder %s139, %s140
    %p154 = scmp.eq.s32.totalorder %s17, 1
    %p155 = por %p153, %p154
    %p157 = scmp.ne.s32.totalorder %s140, %s156
    %p158 = scmp.eq.s32.totalorder %s17, 0
    %p159 = por %p157, %p158
    %p160 = scmp.le.s32.totalorder 1, %s11
    %p161 = scmp.lt.s32.totalorder %s11, 3
    %p162 = pnand %p160, %p161
    %p163 = pneg %p162
    // Predicated region
    $region9: #{dy_mixprop_forward.1} parent=5 // pred_check
      _
    $region10: #{dy_mixprop_forward.1} parent=5 // pred_check_branch
      %165 = sbr.rel (%p162) target = $region12
    $region11: #{dy_mixprop_forward.1} parent=5 // pred_region
      %s166 = ssub.s32 %s11, 1
      // Predicated region
      $region13: #{dy_mixprop_forward.1} parent=11 // pred_check
        %p167 = pneg %p84
      $region14: #{dy_mixprop_forward.1} parent=11 // pred_check_branch
        %169 = sbr.rel (%p167) target = $region16
      $region15: #{dy_mixprop_forward.1} parent=11 // pred_region
        _
      $region16: #{dy_mixprop_forward.1} parent=11 // pred_fallthru
        _
      // Predicated region
      $region17: #{dy_mixprop_forward.1} parent=11 // pred_check
        %p170 = pneg %p105
      $region18: #{dy_mixprop_forward.1} parent=11 // pred_check_branch
        %172 = sbr.rel (%p170) target = $region20
      $region19: #{dy_mixprop_forward.1} parent=11 // pred_region
        _
      $region20: #{dy_mixprop_forward.1} parent=11 // pred_fallthru
        _
      // Predicated region
      $region21: #{dy_mixprop_forward.1} parent=11 // pred_check
        %p173 = pneg %p126
      $region22: #{dy_mixprop_forward.1} parent=11 // pred_check_branch
        %175 = sbr.rel (%p173) target = $region24
      $region23: #{dy_mixprop_forward.1} parent=11 // pred_region
        _
      $region24: #{dy_mixprop_forward.1} parent=11 // pred_fallthru
        _
    $region12: #{dy_mixprop_forward.1} parent=5 // pred_fallthru
      _
    %p176 = scmp.lt.s32.totalorder %s11, 2
    // Predicated region
    $region25: #{dy_mixprop_forward.1} parent=5 // pred_check
      %p177 = pneg %p176
    $region26: #{dy_mixprop_forward.1} parent=5 // pred_check_branch
      %179 = sbr.rel (%p177) target = $region28
    $region27: #{dy_mixprop_forward.1} parent=5 // pred_region
      // Predicated region
      $region29: #{dy_mixprop_forward.1} parent=27 // pred_check
        %p180 = pneg %p31
      $region30: #{dy_mixprop_forward.1} parent=27 // pred_check_branch
        %182 = sbr.rel (%p180) target = $region32
      $region31: #{dy_mixprop_forward.1} parent=27 // pred_region
        %p183 = scmp.lt.s32.totalorder %s11, 1
        %s184 = scalar_select %p183, %s11, 1
        %s185 = smul.addr %s184, 16
        %s186 = smul.addr %s185, 8
        %s187 = scalar_lea.vmem %s0, %s186
      $region32: #{dy_mixprop_forward.1} parent=27 // pred_fallthru
        _
      // Predicated region
      $region33: #{dy_mixprop_forward.1} parent=27 // pred_check
        %p188 = pneg %p57
      $region34: #{dy_mixprop_forward.1} parent=27 // pred_check_branch
        %190 = sbr.rel (%p188) target = $region36
      $region35: #{dy_mixprop_forward.1} parent=27 // pred_region
        %p191 = scmp.lt.s32.totalorder %s11, 1
        %s192 = scalar_select %p191, %s11, 1
        %s193 = smul.addr %s192, 2
        %s194 = smul.addr %s193, 8
        %s195 = scalar_lea.vmem %s1, %s194
      $region36: #{dy_mixprop_forward.1} parent=27 // pred_fallthru
        _
    $region28: #{dy_mixprop_forward.1} parent=5 // pred_fallthru
      _
    %p196 = scmp.le.s32.totalorder 1, %s11
    %p197 = scmp.lt.s32.totalorder %s11, 3
    %p198 = pnand %p196, %p197
    %p199 = pneg %p198
    // Predicated region
    $region37: #{dy_mixprop_forward.1} parent=5 // pred_check
      _
    $region38: #{dy_mixprop_forward.1} parent=5 // pred_check_branch
      %201 = sbr.rel (%p198) target = $region40
    $region39: #{dy_mixprop_forward.1} parent=5 // pred_region
      %s202 = ssub.s32 %s11, 1
      %p203 = scmp.lt.s32.totalorder %s16, 1
      %s204 = scalar_select %p203, %s16, 1
      %s205 = smul.addr %s204, 16
      %s206 = smul.addr %s205, 8
      %s207 = scalar_lea.vmem %s0, %s206
      %p208 = pneg %p37
      %p209 = pneg %p34
      %p210 = scmp.lt.s32.totalorder %s16, 1
      %s211 = scalar_select %p210, %s16, 1
      %s212 = smul.addr %s211, 2
      %s213 = smul.addr %s212, 8
      %s214 = scalar_lea.vmem %s1, %s213
      %p215 = pneg %p63
      %p216 = pneg %p60
      %p217 = pneg %p84
      %p218 = pneg %p81
      %p219 = pneg %p105
      %p220 = pneg %p102
      %p221 = pneg %p126
      %p222 = pneg %p123
      %p223 = pneg %p152
      %p224 = pneg %p149
      %p225 = scmp.lt.s32.totalorder %s16, 1
      %s226 = scalar_select %p225, %s16, 1
      %s227 = smul.addr %s226, 16
      %s228 = smul.addr %s227, 8
      %s229 = scalar_lea.vmem %s5, %s228
      %p230 = scmp.lt.s32.totalorder %s16, 1
      %s231 = scalar_select %p230, %s16, 1
      %s232 = smul.addr %s231, 16
      %s233 = smul.addr %s232, 8
      %s234 = scalar_lea.vmem %s0, %s233
      %p235 = scmp.lt.s32.totalorder %s16, 1
      %s236 = scalar_select %p235, %s16, 1
      %s237 = smul.addr %s236, 2
      %s238 = smul.addr %s237, 8
      %s239 = scalar_lea.vmem %s1, %s238
      %p240 = scmp.lt.s32.totalorder %s16, 1
      %s241 = scalar_select %p240, %s16, 1
      %s242 = smul.addr %s241, 16
      %s243 = smul.addr %s242, 8
      %s244 = scalar_lea.vmem %s5, %s243
      %v245 = vld [vmem:[%s234] sm:$0xff]
      %v246 = vld [vmem:[%s234 + $0x8] sm:$0xff]
      %v247 = vld [vmem:[%s234 + $0x10] sm:$0xff]
      %v248 = vld [vmem:[%s234 + $0x18] sm:$0xff]
      %v249 = vld [vmem:[%s234 + $0x20] sm:$0xff]
      %v250 = vld [vmem:[%s234 + $0x28] sm:$0xff]
      %v251 = vld [vmem:[%s234 + $0x30] sm:$0xff]
      %v252 = vld [vmem:[%s234 + $0x38] sm:$0xff]
      %v253 = vld [vmem:[%s234 + $0x40] sm:$0xff]
      %v254 = vld [vmem:[%s234 + $0x48] sm:$0xff]
      %v255 = vld [vmem:[%s234 + $0x50] sm:$0xff]
      %v256 = vld [vmem:[%s234 + $0x58] sm:$0xff]
      %v257 = vld [vmem:[%s234 + $0x60] sm:$0xff]
      %v258 = vld [vmem:[%s234 + $0x68] sm:$0xff]
      %v259 = vld [vmem:[%s234 + $0x70] sm:$0xff]
      %v260 = vld [vmem:[%s234 + $0x78] sm:$0xff]
      %v261 = vld [vmem:[%s239] sm:$0xff]
      %v262 = vld [vmem:[%s239 + $0x8] sm:$0xff]
      %v263 = vld [vmem:[%s2] sm:$0xff]
      %v264 = vld [vmem:[%s2 + $0x8] sm:$0xff]
      %v265 = vld [vmem:[%s3] sm:$0xff]
      %v266 = vld [vmem:[%s3 + $0x8] sm:$0xff]
      %v267 = vadd.f32 %v263, %v265
      %v268 = vadd.f32 %v264, %v266
      %v269 = vmul.f32 %v245, 0.05
      %v270 = vmul.f32 %v246, 0.05
      %v271 = vmul.f32 %v247, 0.05
      %v272 = vmul.f32 %v248, 0.05
      %v273 = vmul.f32 %v249, 0.05
      %v274 = vmul.f32 %v250, 0.05
      %v275 = vmul.f32 %v251, 0.05
      %v276 = vmul.f32 %v252, 0.05
      %v277 = vmul.f32 %v253, 0.05
      %v278 = vmul.f32 %v254, 0.05
      %v279 = vmul.f32 %v255, 0.05
      %v280 = vmul.f32 %v256, 0.05
      %v281 = vmul.f32 %v257, 0.05
      %v282 = vmul.f32 %v258, 0.05
      %v283 = vmul.f32 %v259, 0.05
      %v284 = vmul.f32 %v260, 0.05
      %v285 = vrot.slane %v247, 4
      %vm286 = vcmask 1047556
      %v287 = vsel %vm286, %v285, %v245
      %v288 = vrot.slane %v245, 4
      %v289 = vsel %vm286, %v247, %v288
      %v291 = vunpack.c.l.s4 1983009808
      %v292 = vunpack.c.0.s8 %v291
      %v293 = vperm.slane %v287, %v292
      %v295 = vunpack.c.l.s4 1983009808
      %v296 = vunpack.c.0.s8 %v295
      %v297 = vperm.slane %v289, %v296
      %v298 = vrot.slane %v248, 4
      %v299 = vsel %vm286, %v298, %v246
      %v300 = vrot.slane %v246, 4
      %v301 = vsel %vm286, %v248, %v300
      %v303 = vunpack.c.l.s4 1983009808
      %v304 = vunpack.c.0.s8 %v303
      %v305 = vperm.slane %v299, %v304
      %v307 = vunpack.c.l.s4 1983009808
      %v308 = vunpack.c.0.s8 %v307
      %v309 = vperm.slane %v301, %v308
      %v310 = vrot.slane %v251, 4
      %v311 = vsel %vm286, %v310, %v249
      %v312 = vrot.slane %v249, 4
      %v313 = vsel %vm286, %v251, %v312
      %v315 = vunpack.c.l.s4 1983009808
      %v316 = vunpack.c.0.s8 %v315
      %v317 = vperm.slane %v311, %v316
      %v319 = vunpack.c.l.s4 1983009808
      %v320 = vunpack.c.0.s8 %v319
      %v321 = vperm.slane %v313, %v320
      %v322 = vrot.slane %v252, 4
      %v323 = vsel %vm286, %v322, %v250
      %v324 = vrot.slane %v250, 4
      %v325 = vsel %vm286, %v252, %v324
      %v327 = vunpack.c.l.s4 1983009808
      %v328 = vunpack.c.0.s8 %v327
      %v329 = vperm.slane %v323, %v328
      %v331 = vunpack.c.l.s4 1983009808
      %v332 = vunpack.c.0.s8 %v331
      %v333 = vperm.slane %v325, %v332
      %v334 = vrot.slane %v305, 4
      %v335 = vsel %vm286, %v334, %v293
      %v336 = vrot.slane %v293, 4
      %v337 = vsel %vm286, %v305, %v336
      %v339 = vunpack.c.l.s4 1934713408
      %v340 = vunpack.c.0.s8 %v339
      %v341 = vperm.slane %v335, %v340
      %v343 = vunpack.c.l.s4 1934713408
      %v344 = vunpack.c.0.s8 %v343
      %v345 = vperm.slane %v337, %v344
      %v346 = vrot.slane %v309, 4
      %v347 = vsel %vm286, %v346, %v297
      %v348 = vrot.slane %v297, 4
      %v349 = vsel %vm286, %v309, %v348
      %v351 = vunpack.c.l.s4 1934713408
      %v352 = vunpack.c.0.s8 %v351
      %v353 = vperm.slane %v347, %v352
      %v355 = vunpack.c.l.s4 1934713408
      %v356 = vunpack.c.0.s8 %v355
      %v357 = vperm.slane %v349, %v356
      %v358 = vrot.slane %v329, 4
      %v359 = vsel %vm286, %v358, %v317
      %v360 = vrot.slane %v317, 4
      %v361 = vsel %vm286, %v329, %v360
      %v363 = vunpack.c.l.s4 1934713408
      %v364 = vunpack.c.0.s8 %v363
      %v365 = vperm.slane %v359, %v364
      %v367 = vunpack.c.l.s4 1934713408
      %v368 = vunpack.c.0.s8 %v367
      %v369 = vperm.slane %v361, %v368
      %v370 = vrot.slane %v333, 4
      %v371 = vsel %vm286, %v370, %v321
      %v372 = vrot.slane %v321, 4
      %v373 = vsel %vm286, %v333, %v372
      %v375 = vunpack.c.l.s4 1934713408
      %v376 = vunpack.c.0.s8 %v375
      %v377 = vperm.slane %v371, %v376
      %v379 = vunpack.c.l.s4 1934713408
      %v380 = vunpack.c.0.s8 %v379
      %v381 = vperm.slane %v373, %v380
      %v382 = vrot.slane %v365, 4
      %v383 = vsel %vm286, %v382, %v341
      %v384 = vrot.slane %v341, 4
      %v385 = vsel %vm286, %v365, %v384
      %v386 = vrot.slane %v369, 4
      %v387 = vsel %vm286, %v386, %v345
      %v388 = vrot.slane %v345, 4
      %v389 = vsel %vm286, %v369, %v388
      %v390 = vrot.slane %v377, 4
      %v391 = vsel %vm286, %v390, %v353
      %v392 = vrot.slane %v353, 4
      %v393 = vsel %vm286, %v377, %v392
      %v394 = vrot.slane %v381, 4
      %v395 = vsel %vm286, %v394, %v357
      %v396 = vrot.slane %v357, 4
      %v397 = vsel %vm286, %v381, %v396
      %v398 = vrot.slane %v255, 4
      %v399 = vsel %vm286, %v398, %v253
      %v400 = vrot.slane %v253, 4
      %v401 = vsel %vm286, %v255, %v400
      %v403 = vunpack.c.l.s4 1983009808
      %v404 = vunpack.c.0.s8 %v403
      %v405 = vperm.slane %v399, %v404
      %v407 = vunpack.c.l.s4 1983009808
      %v408 = vunpack.c.0.s8 %v407
      %v409 = vperm.slane %v401, %v408
      %v410 = vrot.slane %v256, 4
      %v411 = vsel %vm286, %v410, %v254
      %v412 = vrot.slane %v254, 4
      %v413 = vsel %vm286, %v256, %v412
      %v415 = vunpack.c.l.s4 1983009808
      %v416 = vunpack.c.0.s8 %v415
      %v417 = vperm.slane %v411, %v416
      %v419 = vunpack.c.l.s4 1983009808
      %v420 = vunpack.c.0.s8 %v419
      %v421 = vperm.slane %v413, %v420
      %v422 = vrot.slane %v259, 4
      %v423 = vsel %vm286, %v422, %v257
      %v424 = vrot.slane %v257, 4
      %v425 = vsel %vm286, %v259, %v424
      %v427 = vunpack.c.l.s4 1983009808
      %v428 = vunpack.c.0.s8 %v427
      %v429 = vperm.slane %v423, %v428
      %v431 = vunpack.c.l.s4 1983009808
      %v432 = vunpack.c.0.s8 %v431
      %v433 = vperm.slane %v425, %v432
      %v434 = vrot.slane %v260, 4
      %v435 = vsel %vm286, %v434, %v258
      %v436 = vrot.slane %v258, 4
      %v437 = vsel %vm286, %v260, %v436
      %v439 = vunpack.c.l.s4 1983009808
      %v440 = vunpack.c.0.s8 %v439
      %v441 = vperm.slane %v435, %v440
      %v443 = vunpack.c.l.s4 1983009808
      %v444 = vunpack.c.0.s8 %v443
      %v445 = vperm.slane %v437, %v444
      %v446 = vrot.slane %v417, 4
      %v447 = vsel %vm286, %v446, %v405
      %v448 = vrot.slane %v405, 4
      %v449 = vsel %vm286, %v417, %v448
      %v451 = vunpack.c.l.s4 1934713408
      %v452 = vunpack.c.0.s8 %v451
      %v453 = vperm.slane %v447, %v452
      %v455 = vunpack.c.l.s4 1934713408
      %v456 = vunpack.c.0.s8 %v455
      %v457 = vperm.slane %v449, %v456
      %v458 = vrot.slane %v421, 4
      %v459 = vsel %vm286, %v458, %v409
      %v460 = vrot.slane %v409, 4
      %v461 = vsel %vm286, %v421, %v460
      %v463 = vunpack.c.l.s4 1934713408
      %v464 = vunpack.c.0.s8 %v463
      %v465 = vperm.slane %v459, %v464
      %v467 = vunpack.c.l.s4 1934713408
      %v468 = vunpack.c.0.s8 %v467
      %v469 = vperm.slane %v461, %v468
      %v470 = vrot.slane %v441, 4
      %v471 = vsel %vm286, %v470, %v429
      %v472 = vrot.slane %v429, 4
      %v473 = vsel %vm286, %v441, %v472
      %v475 = vunpack.c.l.s4 1934713408
      %v476 = vunpack.c.0.s8 %v475
      %v477 = vperm.slane %v471, %v476
      %v479 = vunpack.c.l.s4 1934713408
      %v480 = vunpack.c.0.s8 %v479
      %v481 = vperm.slane %v473, %v480
      %v482 = vrot.slane %v445, 4
      %v483 = vsel %vm286, %v482, %v433
      %v484 = vrot.slane %v433, 4
      %v485 = vsel %vm286, %v445, %v484
      %v487 = vunpack.c.l.s4 1934713408
      %v488 = vunpack.c.0.s8 %v487
      %v489 = vperm.slane %v483, %v488
      %v491 = vunpack.c.l.s4 1934713408
      %v492 = vunpack.c.0.s8 %v491
      %v493 = vperm.slane %v485, %v492
      %v494 = vrot.slane %v477, 4
      %v495 = vsel %vm286, %v494, %v453
      %v496 = vrot.slane %v453, 4
      %v497 = vsel %vm286, %v477, %v496
      %v498 = vrot.slane %v481, 4
      %v499 = vsel %vm286, %v498, %v457
      %v500 = vrot.slane %v457, 4
      %v501 = vsel %vm286, %v481, %v500
      %v502 = vrot.slane %v489, 4
      %v503 = vsel %vm286, %v502, %v465
      %v504 = vrot.slane %v465, 4
      %v505 = vsel %vm286, %v489, %v504
      %v506 = vrot.slane %v493, 4
      %v507 = vsel %vm286, %v506, %v469
      %v508 = vrot.slane %v469, 4
      %v509 = vsel %vm286, %v493, %v508
      %512 = vrot.lane.b32.xlu0 %v385, 16
      %v513 = vpop.permute.xlu0 %512
      %514 = vrot.lane.b32.xlu0 %v497, 16
      %v515 = vpop.permute.xlu0 %514
      %520 = vrot.lane.b32.xlu0 %v387, 32
      %v521 = vpop.permute.xlu0 %520
      %522 = vrot.lane.b32.xlu0 %v499, 32
      %v523 = vpop.permute.xlu0 %522
      %528 = vrot.lane.b32.xlu0 %v389, 48
      %v529 = vpop.permute.xlu0 %528
      %530 = vrot.lane.b32.xlu0 %v501, 48
      %v531 = vpop.permute.xlu0 %530
      %536 = vrot.lane.b32.xlu0 %v391, 64
      %v537 = vpop.permute.xlu0 %536
      %538 = vrot.lane.b32.xlu0 %v503, 64
      %v539 = vpop.permute.xlu0 %538
      %544 = vrot.lane.b32.xlu0 %v393, 80
      %v545 = vpop.permute.xlu0 %544
      %546 = vrot.lane.b32.xlu0 %v505, 80
      %v547 = vpop.permute.xlu0 %546
      %552 = vrot.lane.b32.xlu0 %v395, 96
      %v553 = vpop.permute.xlu0 %552
      %554 = vrot.lane.b32.xlu0 %v507, 96
      %v555 = vpop.permute.xlu0 %554
      %560 = vrot.lane.b32.xlu0 %v397, 112
      %v561 = vpop.permute.xlu0 %560
      %562 = vrot.lane.b32.xlu0 %v509, 112
      %v563 = vpop.permute.xlu0 %562
      %vm566 = vcmask 130048
      %v567 = vsel %vm566, %v383, %v513
      %v568 = vsel %vm566, %v495, %v515
      %vm569 = vcmask 261120
      %v570 = vsel %vm569, %v567, %v521
      %v571 = vsel %vm569, %v568, %v523
      %vm572 = vcmask 392192
      %v573 = vsel %vm572, %v570, %v529
      %v574 = vsel %vm572, %v571, %v531
      %vm575 = vcmask 523264
      %v576 = vsel %vm575, %v573, %v537
      %v577 = vsel %vm575, %v574, %v539
      %vm578 = vcmask 654336
      %v579 = vsel %vm578, %v576, %v545
      %v580 = vsel %vm578, %v577, %v547
      %vm581 = vcmask 785408
      %v582 = vsel %vm581, %v579, %v553
      %v583 = vsel %vm581, %v580, %v555
      %vm584 = vcmask 916480
      %v585 = vsel %vm584, %v582, %v561
      %v586 = vsel %vm584, %v583, %v563
      %587 = vxpose.xlu0.b32.start [1/16] %v261, 128
      %588 = vxpose.xlu0.b32.cont [2/16] %v262, 128
      %589 = vxpose.xlu0.b32.cont [3/16] 0.0, 128
      %590 = vxpose.xlu0.b32.cont [4/16] 0.0, 128
      %591 = vxpose.xlu0.b32.cont [5/16] 0.0, 128
      %592 = vxpose.xlu0.b32.cont [6/16] 0.0, 128
      %593 = vxpose.xlu0.b32.cont [7/16] 0.0, 128
      %594 = vxpose.xlu0.b32.cont [8/16] 0.0, 128
      %595 = vxpose.xlu0.b32.cont [9/16] 0.0, 128
      %596 = vxpose.xlu0.b32.cont [10/16] 0.0, 128
      %597 = vxpose.xlu0.b32.cont [11/16] 0.0, 128
      %598 = vxpose.xlu0.b32.cont [12/16] 0.0, 128
      %599 = vxpose.xlu0.b32.cont [13/16] 0.0, 128
      %600 = vxpose.xlu0.b32.cont [14/16] 0.0, 128
      %601 = vxpose.xlu0.b32.cont [15/16] 0.0, 128
      %602 = vxpose.xlu0.b32.end [16/16] 0.0, 128
      %v603 = vpop.trf.xlu0
      %v604 = vpop.trf.xlu0
      %v605 = vpop.trf.xlu0
      %v606 = vpop.trf.xlu0
      %v607 = vpop.trf.xlu0
      %v608 = vpop.trf.xlu0
      %v609 = vpop.trf.xlu0
      %v610 = vpop.trf.xlu0
      %v611 = vpop.trf.xlu0
      %v612 = vpop.trf.xlu0
      %v613 = vpop.trf.xlu0
      %v614 = vpop.trf.xlu0
      %v615 = vpop.trf.xlu0
      %v616 = vpop.trf.xlu0
      %v617 = vpop.trf.xlu0
      %v618 = vpop.trf.xlu0
      %v620 = vsel %vm566, %v603, 0
      %v623 = vsel %vm566, %v604, 0
      %625 = vmatpush.msra.mxu0 0.0
      %626 = vmatpush.msra.mxu0 0.0
      %627 = vmatpush.msra.mxu0 0.0
      %628 = vmatpush.msra.mxu0 0.0
      %629 = vmatpush.msra.mxu0 0.0
      %630 = vmatpush.msra.mxu0 0.0
      %631 = vmatpush.msra.mxu0 0.0
      %632 = vmatpush.msra.mxu0 0.0
      %633 = vmatpush.msra.mxu0 0.0
      %634 = vmatpush.msra.mxu0 0.0
      %635 = vmatpush.msra.mxu0 0.0
      %636 = vmatpush.msra.mxu0 0.0
      %637 = vmatpush.msra.mxu0 0.0
      %638 = vmatpush.msra.mxu0 0.0
      %639 = vmatpush.msra.mxu0 %v586
      %640 = vmatpush.msra.mxu0 %v585
      %641 = vmatmul.f32.gmra.mxu0 %v620
      %v642 = vpop.f32.mrf.mxu0
      %v643 = vadd.f32 0.0, %v642
      %644 = vmatmul.f32.gmra.mxu0 %v623
      %v645 = vpop.f32.mrf.mxu0
      %v646 = vadd.f32 0.0, %v645
      %647 = vdwg.mxu0
      %650 = vrot.lane.b32.xlu0 %v643, 112
      %v651 = vpop.permute.xlu0 %650
      %652 = vrot.lane.b32.xlu0 %v646, 112
      %v653 = vpop.permute.xlu0 %652
      %656 = vrot.lane.b32.xlu0 %v643, 96
      %v657 = vpop.permute.xlu0 %656
      %658 = vrot.lane.b32.xlu0 %v646, 96
      %v659 = vpop.permute.xlu0 %658
      %662 = vrot.lane.b32.xlu0 %v643, 80
      %v663 = vpop.permute.xlu0 %662
      %664 = vrot.lane.b32.xlu0 %v646, 80
      %v665 = vpop.permute.xlu0 %664
      %668 = vrot.lane.b32.xlu0 %v643, 64
      %v669 = vpop.permute.xlu0 %668
      %670 = vrot.lane.b32.xlu0 %v646, 64
      %v671 = vpop.permute.xlu0 %670
      %674 = vrot.lane.b32.xlu0 %v643, 48
      %v675 = vpop.permute.xlu0 %674
      %676 = vrot.lane.b32.xlu0 %v646, 48
      %v677 = vpop.permute.xlu0 %676
      %680 = vrot.lane.b32.xlu0 %v643, 32
      %v681 = vpop.permute.xlu0 %680
      %682 = vrot.lane.b32.xlu0 %v646, 32
      %v683 = vpop.permute.xlu0 %682
      %686 = vrot.lane.b32.xlu0 %v643, 16
      %v687 = vpop.permute.xlu0 %686
      %688 = vrot.lane.b32.xlu0 %v646, 16
      %v689 = vpop.permute.xlu0 %688
      %v692 = vrot.slane %v657, 4
      %v693 = vsel %vm286, %v692, %v643
      %v694 = vrot.slane %v643, 4
      %v695 = vsel %vm286, %v657, %v694
      %v697 = vunpack.c.l.s4 1983009808
      %v698 = vunpack.c.0.s8 %v697
      %v699 = vperm.slane %v693, %v698
      %v701 = vunpack.c.l.s4 1983009808
      %v702 = vunpack.c.0.s8 %v701
      %v703 = vperm.slane %v695, %v702
      %v704 = vrot.slane %v663, 4
      %v705 = vsel %vm286, %v704, %v651
      %v706 = vrot.slane %v651, 4
      %v707 = vsel %vm286, %v663, %v706
      %v709 = vunpack.c.l.s4 1983009808
      %v710 = vunpack.c.0.s8 %v709
      %v711 = vperm.slane %v705, %v710
      %v713 = vunpack.c.l.s4 1983009808
      %v714 = vunpack.c.0.s8 %v713
      %v715 = vperm.slane %v707, %v714
      %v716 = vrot.slane %v681, 4
      %v717 = vsel %vm286, %v716, %v669
      %v718 = vrot.slane %v669, 4
      %v719 = vsel %vm286, %v681, %v718
      %v721 = vunpack.c.l.s4 1983009808
      %v722 = vunpack.c.0.s8 %v721
      %v723 = vperm.slane %v717, %v722
      %v725 = vunpack.c.l.s4 1983009808
      %v726 = vunpack.c.0.s8 %v725
      %v727 = vperm.slane %v719, %v726
      %v728 = vrot.slane %v687, 4
      %v729 = vsel %vm286, %v728, %v675
      %v730 = vrot.slane %v675, 4
      %v731 = vsel %vm286, %v687, %v730
      %v733 = vunpack.c.l.s4 1983009808
      %v734 = vunpack.c.0.s8 %v733
      %v735 = vperm.slane %v729, %v734
      %v737 = vunpack.c.l.s4 1983009808
      %v738 = vunpack.c.0.s8 %v737
      %v739 = vperm.slane %v731, %v738
      %v740 = vrot.slane %v711, 4
      %v741 = vsel %vm286, %v740, %v699
      %v742 = vrot.slane %v699, 4
      %v743 = vsel %vm286, %v711, %v742
      %v745 = vunpack.c.l.s4 1934713408
      %v746 = vunpack.c.0.s8 %v745
      %v747 = vperm.slane %v741, %v746
      %v749 = vunpack.c.l.s4 1934713408
      %v750 = vunpack.c.0.s8 %v749
      %v751 = vperm.slane %v743, %v750
      %v752 = vrot.slane %v715, 4
      %v753 = vsel %vm286, %v752, %v703
      %v754 = vrot.slane %v703, 4
      %v755 = vsel %vm286, %v715, %v754
      %v757 = vunpack.c.l.s4 1934713408
      %v758 = vunpack.c.0.s8 %v757
      %v759 = vperm.slane %v753, %v758
      %v761 = vunpack.c.l.s4 1934713408
      %v762 = vunpack.c.0.s8 %v761
      %v763 = vperm.slane %v755, %v762
      %v764 = vrot.slane %v735, 4
      %v765 = vsel %vm286, %v764, %v723
      %v766 = vrot.slane %v723, 4
      %v767 = vsel %vm286, %v735, %v766
      %v769 = vunpack.c.l.s4 1934713408
      %v770 = vunpack.c.0.s8 %v769
      %v771 = vperm.slane %v765, %v770
      %v773 = vunpack.c.l.s4 1934713408
      %v774 = vunpack.c.0.s8 %v773
      %v775 = vperm.slane %v767, %v774
      %v776 = vrot.slane %v739, 4
      %v777 = vsel %vm286, %v776, %v727
      %v778 = vrot.slane %v727, 4
      %v779 = vsel %vm286, %v739, %v778
      %v781 = vunpack.c.l.s4 1934713408
      %v782 = vunpack.c.0.s8 %v781
      %v783 = vperm.slane %v777, %v782
      %v785 = vunpack.c.l.s4 1934713408
      %v786 = vunpack.c.0.s8 %v785
      %v787 = vperm.slane %v779, %v786
      %v788 = vrot.slane %v771, 4
      %v789 = vsel %vm286, %v788, %v747
      %v790 = vrot.slane %v747, 4
      %v791 = vsel %vm286, %v771, %v790
      %v792 = vrot.slane %v775, 4
      %v793 = vsel %vm286, %v792, %v751
      %v794 = vrot.slane %v751, 4
      %v795 = vsel %vm286, %v775, %v794
      %v796 = vrot.slane %v783, 4
      %v797 = vsel %vm286, %v796, %v759
      %v798 = vrot.slane %v759, 4
      %v799 = vsel %vm286, %v783, %v798
      %v800 = vrot.slane %v787, 4
      %v801 = vsel %vm286, %v800, %v763
      %v802 = vrot.slane %v763, 4
      %v803 = vsel %vm286, %v787, %v802
      %v804 = vrot.slane %v659, 4
      %v805 = vsel %vm286, %v804, %v646
      %v806 = vrot.slane %v646, 4
      %v807 = vsel %vm286, %v659, %v806
      %v809 = vunpack.c.l.s4 1983009808
      %v810 = vunpack.c.0.s8 %v809
      %v811 = vperm.slane %v805, %v810
      %v813 = vunpack.c.l.s4 1983009808
      %v814 = vunpack.c.0.s8 %v813
      %v815 = vperm.slane %v807, %v814
      %v816 = vrot.slane %v665, 4
      %v817 = vsel %vm286, %v816, %v653
      %v818 = vrot.slane %v653, 4
      %v819 = vsel %vm286, %v665, %v818
      %v821 = vunpack.c.l.s4 1983009808
      %v822 = vunpack.c.0.s8 %v821
      %v823 = vperm.slane %v817, %v822
      %v825 = vunpack.c.l.s4 1983009808
      %v826 = vunpack.c.0.s8 %v825
      %v827 = vperm.slane %v819, %v826
      %v828 = vrot.slane %v683, 4
      %v829 = vsel %vm286, %v828, %v671
      %v830 = vrot.slane %v671, 4
      %v831 = vsel %vm286, %v683, %v830
      %v833 = vunpack.c.l.s4 1983009808
      %v834 = vunpack.c.0.s8 %v833
      %v835 = vperm.slane %v829, %v834
      %v837 = vunpack.c.l.s4 1983009808
      %v838 = vunpack.c.0.s8 %v837
      %v839 = vperm.slane %v831, %v838
      %v840 = vrot.slane %v689, 4
      %v841 = vsel %vm286, %v840, %v677
      %v842 = vrot.slane %v677, 4
      %v843 = vsel %vm286, %v689, %v842
      %v845 = vunpack.c.l.s4 1983009808
      %v846 = vunpack.c.0.s8 %v845
      %v847 = vperm.slane %v841, %v846
      %v849 = vunpack.c.l.s4 1983009808
      %v850 = vunpack.c.0.s8 %v849
      %v851 = vperm.slane %v843, %v850
      %v852 = vrot.slane %v823, 4
      %v853 = vsel %vm286, %v852, %v811
      %v854 = vrot.slane %v811, 4
      %v855 = vsel %vm286, %v823, %v854
      %v857 = vunpack.c.l.s4 1934713408
      %v858 = vunpack.c.0.s8 %v857
      %v859 = vperm.slane %v853, %v858
      %v861 = vunpack.c.l.s4 1934713408
      %v862 = vunpack.c.0.s8 %v861
      %v863 = vperm.slane %v855, %v862
      %v864 = vrot.slane %v827, 4
      %v865 = vsel %vm286, %v864, %v815
      %v866 = vrot.slane %v815, 4
      %v867 = vsel %vm286, %v827, %v866
      %v869 = vunpack.c.l.s4 1934713408
      %v870 = vunpack.c.0.s8 %v869
      %v871 = vperm.slane %v865, %v870
      %v873 = vunpack.c.l.s4 1934713408
      %v874 = vunpack.c.0.s8 %v873
      %v875 = vperm.slane %v867, %v874
      %v876 = vrot.slane %v847, 4
      %v877 = vsel %vm286, %v876, %v835
      %v878 = vrot.slane %v835, 4
      %v879 = vsel %vm286, %v847, %v878
      %v881 = vunpack.c.l.s4 1934713408
      %v882 = vunpack.c.0.s8 %v881
      %v883 = vperm.slane %v877, %v882
      %v885 = vunpack.c.l.s4 1934713408
      %v886 = vunpack.c.0.s8 %v885
      %v887 = vperm.slane %v879, %v886
      %v888 = vrot.slane %v851, 4
      %v889 = vsel %vm286, %v888, %v839
      %v890 = vrot.slane %v839, 4
      %v891 = vsel %vm286, %v851, %v890
      %v893 = vunpack.c.l.s4 1934713408
      %v894 = vunpack.c.0.s8 %v893
      %v895 = vperm.slane %v889, %v894
      %v897 = vunpack.c.l.s4 1934713408
      %v898 = vunpack.c.0.s8 %v897
      %v899 = vperm.slane %v891, %v898
      %v900 = vrot.slane %v883, 4
      %v901 = vsel %vm286, %v900, %v859
      %v902 = vrot.slane %v859, 4
      %v903 = vsel %vm286, %v883, %v902
      %v904 = vrot.slane %v887, 4
      %v905 = vsel %vm286, %v904, %v863
      %v906 = vrot.slane %v863, 4
      %v907 = vsel %vm286, %v887, %v906
      %v908 = vrot.slane %v895, 4
      %v909 = vsel %vm286, %v908, %v871
      %v910 = vrot.slane %v871, 4
      %v911 = vsel %vm286, %v895, %v910
      %v912 = vrot.slane %v899, 4
      %v913 = vsel %vm286, %v912, %v875
      %v914 = vrot.slane %v875, 4
      %v915 = vsel %vm286, %v899, %v914
      %v916 = vmul.f32 %v789, 0.95
      %v917 = vmul.f32 %v791, 0.95
      %v918 = vmul.f32 %v793, 0.95
      %v919 = vmul.f32 %v795, 0.95
      %v920 = vmul.f32 %v797, 0.95
      %v921 = vmul.f32 %v799, 0.95
      %v922 = vmul.f32 %v801, 0.95
      %v923 = vmul.f32 %v803, 0.95
      %v924 = vmul.f32 %v901, 0.95
      %v925 = vmul.f32 %v903, 0.95
      %v926 = vmul.f32 %v905, 0.95
      %v927 = vmul.f32 %v907, 0.95
      %v928 = vmul.f32 %v909, 0.95
      %v929 = vmul.f32 %v911, 0.95
      %v930 = vmul.f32 %v913, 0.95
      %v931 = vmul.f32 %v915, 0.95
      %v932 = vadd.f32 %v269, %v916
      %v933 = vadd.f32 %v270, %v917
      %v934 = vadd.f32 %v271, %v918
      %v935 = vadd.f32 %v272, %v919
      %v936 = vadd.f32 %v273, %v920
      %v937 = vadd.f32 %v274, %v921
      %v938 = vadd.f32 %v275, %v922
      %v939 = vadd.f32 %v276, %v923
      %v940 = vadd.f32 %v277, %v924
      %v941 = vadd.f32 %v278, %v925
      %v942 = vadd.f32 %v279, %v926
      %v943 = vadd.f32 %v280, %v927
      %v944 = vadd.f32 %v281, %v928
      %v945 = vadd.f32 %v282, %v929
      %v946 = vadd.f32 %v283, %v930
      %v947 = vadd.f32 %v284, %v931
      %s948 = scalar_lea.vmem %s2, 16
      %v949 = vld [vmem:[%s948] sm:$0xff]
      %v950 = vld [vmem:[%s948 + $0x8] sm:$0xff]
      %v952 = vsel %vm566, %v932, 0
      %v955 = vsel %vm566, %v933, 0
      %v958 = vsel %vm566, %v934, 0
      %v961 = vsel %vm566, %v935, 0
      %v964 = vsel %vm566, %v936, 0
      %v967 = vsel %vm566, %v937, 0
      %v970 = vsel %vm566, %v938, 0
      %v973 = vsel %vm566, %v939, 0
      %v976 = vsel %vm566, %v940, 0
      %v979 = vsel %vm566, %v941, 0
      %v982 = vsel %vm566, %v942, 0
      %v985 = vsel %vm566, %v943, 0
      %v988 = vsel %vm566, %v944, 0
      %v991 = vsel %vm566, %v945, 0
      %v994 = vsel %vm566, %v946, 0
      %v997 = vsel %vm566, %v947, 0
      %999 = vmatpush.msra.mxu0 0.0
      %1000 = vmatpush.msra.mxu0 0.0
      %1001 = vmatpush.msra.mxu0 0.0
      %1002 = vmatpush.msra.mxu0 0.0
      %1003 = vmatpush.msra.mxu0 0.0
      %1004 = vmatpush.msra.mxu0 0.0
      %1005 = vmatpush.msra.mxu0 0.0
      %1006 = vmatpush.msra.mxu0 0.0
      %1007 = vmatpush.msra.mxu0 0.0
      %1008 = vmatpush.msra.mxu0 0.0
      %1009 = vmatpush.msra.mxu0 0.0
      %1010 = vmatpush.msra.mxu0 0.0
      %1011 = vmatpush.msra.mxu0 0.0
      %1012 = vmatpush.msra.mxu0 0.0
      %1013 = vmatpush.msra.mxu0 %v950
      %1014 = vmatpush.msra.mxu0 %v949
      %1015 = vmatmul.f32.gmra.mxu0 %v952
      %v1016 = vpop.f32.mrf.mxu0
      %v1017 = vadd.f32 0.0, %v1016
      %1018 = vmatmul.f32.gmra.mxu0 %v955
      %v1019 = vpop.f32.mrf.mxu0
      %v1020 = vadd.f32 0.0, %v1019
      %1021 = vmatmul.f32.gmra.mxu0 %v958
      %v1022 = vpop.f32.mrf.mxu0
      %v1023 = vadd.f32 0.0, %v1022
      %1024 = vmatmul.f32.gmra.mxu0 %v961
      %v1025 = vpop.f32.mrf.mxu0
      %v1026 = vadd.f32 0.0, %v1025
      %1027 = vmatmul.f32.gmra.mxu0 %v964
      %v1028 = vpop.f32.mrf.mxu0
      %v1029 = vadd.f32 0.0, %v1028
      %1030 = vmatmul.f32.gmra.mxu0 %v967
      %v1031 = vpop.f32.mrf.mxu0
      %v1032 = vadd.f32 0.0, %v1031
      %1033 = vmatmul.f32.gmra.mxu0 %v970
      %v1034 = vpop.f32.mrf.mxu0
      %v1035 = vadd.f32 0.0, %v1034
      %1036 = vmatmul.f32.gmra.mxu0 %v973
      %v1037 = vpop.f32.mrf.mxu0
      %v1038 = vadd.f32 0.0, %v1037
      %1039 = vmatmul.f32.gmra.mxu0 %v976
      %v1040 = vpop.f32.mrf.mxu0
      %v1041 = vadd.f32 0.0, %v1040
      %1042 = vmatmul.f32.gmra.mxu0 %v979
      %v1043 = vpop.f32.mrf.mxu0
      %v1044 = vadd.f32 0.0, %v1043
      %1045 = vmatmul.f32.gmra.mxu0 %v982
      %v1046 = vpop.f32.mrf.mxu0
      %v1047 = vadd.f32 0.0, %v1046
      %1048 = vmatmul.f32.gmra.mxu0 %v985
      %v1049 = vpop.f32.mrf.mxu0
      %v1050 = vadd.f32 0.0, %v1049
      %1051 = vmatmul.f32.gmra.mxu0 %v988
      %v1052 = vpop.f32.mrf.mxu0
      %v1053 = vadd.f32 0.0, %v1052
      %1054 = vmatmul.f32.gmra.mxu0 %v991
      %v1055 = vpop.f32.mrf.mxu0
      %v1056 = vadd.f32 0.0, %v1055
      %1057 = vmatmul.f32.gmra.mxu0 %v994
      %v1058 = vpop.f32.mrf.mxu0
      %v1059 = vadd.f32 0.0, %v1058
      %1060 = vmatmul.f32.gmra.mxu0 %v997
      %v1061 = vpop.f32.mrf.mxu0
      %v1062 = vadd.f32 0.0, %v1061
      %1063 = vdwg.mxu0
      %v1065 = vsel %vm566, %v245, 0
      %v1068 = vsel %vm566, %v246, 0
      %v1071 = vsel %vm566, %v247, 0
      %v1074 = vsel %vm566, %v248, 0
      %v1077 = vsel %vm566, %v249, 0
      %v1080 = vsel %vm566, %v250, 0
      %v1083 = vsel %vm566, %v251, 0
      %v1086 = vsel %vm566, %v252, 0
      %v1089 = vsel %vm566, %v253, 0
      %v1092 = vsel %vm566, %v254, 0
      %v1095 = vsel %vm566, %v255, 0
      %v1098 = vsel %vm566, %v256, 0
      %v1101 = vsel %vm566, %v257, 0
      %v1104 = vsel %vm566, %v258, 0
      %v1107 = vsel %vm566, %v259, 0
      %v1110 = vsel %vm566, %v260, 0
      %1112 = vmatpush.msra.mxu0 0.0
      %1113 = vmatpush.msra.mxu0 0.0
      %1114 = vmatpush.msra.mxu0 0.0
      %1115 = vmatpush.msra.mxu0 0.0
      %1116 = vmatpush.msra.mxu0 0.0
      %1117 = vmatpush.msra.mxu0 0.0
      %1118 = vmatpush.msra.mxu0 0.0
      %1119 = vmatpush.msra.mxu0 0.0
      %1120 = vmatpush.msra.mxu0 0.0
      %1121 = vmatpush.msra.mxu0 0.0
      %1122 = vmatpush.msra.mxu0 0.0
      %1123 = vmatpush.msra.mxu0 0.0
      %1124 = vmatpush.msra.mxu0 0.0
      %1125 = vmatpush.msra.mxu0 0.0
      %1126 = vmatpush.msra.mxu0 %v268
      %1127 = vmatpush.msra.mxu0 %v267
      %1128 = vmatmul.f32.gmra.mxu0 %v1065
      %v1129 = vpop.f32.mrf.mxu0
      %v1130 = vadd.f32 %v1017, %v1129
      %1131 = vmatmul.f32.gmra.mxu0 %v1068
      %v1132 = vpop.f32.mrf.mxu0
      %v1133 = vadd.f32 %v1020, %v1132
      %1134 = vmatmul.f32.gmra.mxu0 %v1071
      %v1135 = vpop.f32.mrf.mxu0
      %v1136 = vadd.f32 %v1023, %v1135
      %1137 = vmatmul.f32.gmra.mxu0 %v1074
      %v1138 = vpop.f32.mrf.mxu0
      %v1139 = vadd.f32 %v1026, %v1138
      %1140 = vmatmul.f32.gmra.mxu0 %v1077
      %v1141 = vpop.f32.mrf.mxu0
      %v1142 = vadd.f32 %v1029, %v1141
      %1143 = vmatmul.f32.gmra.mxu0 %v1080
      %v1144 = vpop.f32.mrf.mxu0
      %v1145 = vadd.f32 %v1032, %v1144
      %1146 = vmatmul.f32.gmra.mxu0 %v1083
      %v1147 = vpop.f32.mrf.mxu0
      %v1148 = vadd.f32 %v1035, %v1147
      %1149 = vmatmul.f32.gmra.mxu0 %v1086
      %v1150 = vpop.f32.mrf.mxu0
      %v1151 = vadd.f32 %v1038, %v1150
      %1152 = vmatmul.f32.gmra.mxu0 %v1089
      %v1153 = vpop.f32.mrf.mxu0
      %v1154 = vadd.f32 %v1041, %v1153
      %1155 = vmatmul.f32.gmra.mxu0 %v1092
      %v1156 = vpop.f32.mrf.mxu0
      %v1157 = vadd.f32 %v1044, %v1156
      %1158 = vmatmul.f32.gmra.mxu0 %v1095
      %v1159 = vpop.f32.mrf.mxu0
      %v1160 = vadd.f32 %v1047, %v1159
      %1161 = vmatmul.f32.gmra.mxu0 %v1098
      %v1162 = vpop.f32.mrf.mxu0
      %v1163 = vadd.f32 %v1050, %v1162
      %1164 = vmatmul.f32.gmra.mxu0 %v1101
      %v1165 = vpop.f32.mrf.mxu0
      %v1166 = vadd.f32 %v1053, %v1165
      %1167 = vmatmul.f32.gmra.mxu0 %v1104
      %v1168 = vpop.f32.mrf.mxu0
      %v1169 = vadd.f32 %v1056, %v1168
      %1170 = vmatmul.f32.gmra.mxu0 %v1107
      %v1171 = vpop.f32.mrf.mxu0
      %v1172 = vadd.f32 %v1059, %v1171
      %1173 = vmatmul.f32.gmra.mxu0 %v1110
      %v1174 = vpop.f32.mrf.mxu0
      %v1175 = vadd.f32 %v1062, %v1174
      %1176 = vdwg.mxu0
      %v1177 = vrot.slane %v934, 4
      %v1178 = vsel %vm286, %v1177, %v932
      %v1179 = vrot.slane %v932, 4
      %v1180 = vsel %vm286, %v934, %v1179
      %v1182 = vunpack.c.l.s4 1983009808
      %v1183 = vunpack.c.0.s8 %v1182
      %v1184 = vperm.slane %v1178, %v1183
      %v1186 = vunpack.c.l.s4 1983009808
      %v1187 = vunpack.c.0.s8 %v1186
      %v1188 = vperm.slane %v1180, %v1187
      %v1189 = vrot.slane %v935, 4
      %v1190 = vsel %vm286, %v1189, %v933
      %v1191 = vrot.slane %v933, 4
      %v1192 = vsel %vm286, %v935, %v1191
      %v1194 = vunpack.c.l.s4 1983009808
      %v1195 = vunpack.c.0.s8 %v1194
      %v1196 = vperm.slane %v1190, %v1195
      %v1198 = vunpack.c.l.s4 1983009808
      %v1199 = vunpack.c.0.s8 %v1198
      %v1200 = vperm.slane %v1192, %v1199
      %v1201 = vrot.slane %v938, 4
      %v1202 = vsel %vm286, %v1201, %v936
      %v1203 = vrot.slane %v936, 4
      %v1204 = vsel %vm286, %v938, %v1203
      %v1206 = vunpack.c.l.s4 1983009808
      %v1207 = vunpack.c.0.s8 %v1206
      %v1208 = vperm.slane %v1202, %v1207
      %v1210 = vunpack.c.l.s4 1983009808
      %v1211 = vunpack.c.0.s8 %v1210
      %v1212 = vperm.slane %v1204, %v1211
      %v1213 = vrot.slane %v939, 4
      %v1214 = vsel %vm286, %v1213, %v937
      %v1215 = vrot.slane %v937, 4
      %v1216 = vsel %vm286, %v939, %v1215
      %v1218 = vunpack.c.l.s4 1983009808
      %v1219 = vunpack.c.0.s8 %v1218
      %v1220 = vperm.slane %v1214, %v1219
      %v1222 = vunpack.c.l.s4 1983009808
      %v1223 = vunpack.c.0.s8 %v1222
      %v1224 = vperm.slane %v1216, %v1223
      %v1225 = vrot.slane %v1196, 4
      %v1226 = vsel %vm286, %v1225, %v1184
      %v1227 = vrot.slane %v1184, 4
      %v1228 = vsel %vm286, %v1196, %v1227
      %v1230 = vunpack.c.l.s4 1934713408
      %v1231 = vunpack.c.0.s8 %v1230
      %v1232 = vperm.slane %v1226, %v1231
      %v1234 = vunpack.c.l.s4 1934713408
      %v1235 = vunpack.c.0.s8 %v1234
      %v1236 = vperm.slane %v1228, %v1235
      %v1237 = vrot.slane %v1200, 4
      %v1238 = vsel %vm286, %v1237, %v1188
      %v1239 = vrot.slane %v1188, 4
      %v1240 = vsel %vm286, %v1200, %v1239
      %v1242 = vunpack.c.l.s4 1934713408
      %v1243 = vunpack.c.0.s8 %v1242
      %v1244 = vperm.slane %v1238, %v1243
      %v1246 = vunpack.c.l.s4 1934713408
      %v1247 = vunpack.c.0.s8 %v1246
      %v1248 = vperm.slane %v1240, %v1247
      %v1249 = vrot.slane %v1220, 4
      %v1250 = vsel %vm286, %v1249, %v1208
      %v1251 = vrot.slane %v1208, 4
      %v1252 = vsel %vm286, %v1220, %v1251
      %v1254 = vunpack.c.l.s4 1934713408
      %v1255 = vunpack.c.0.s8 %v1254
      %v1256 = vperm.slane %v1250, %v1255
      %v1258 = vunpack.c.l.s4 1934713408
      %v1259 = vunpack.c.0.s8 %v1258
      %v1260 = vperm.slane %v1252, %v1259
      %v1261 = vrot.slane %v1224, 4
      %v1262 = vsel %vm286, %v1261, %v1212
      %v1263 = vrot.slane %v1212, 4
      %v1264 = vsel %vm286, %v1224, %v1263
      %v1266 = vunpack.c.l.s4 1934713408
      %v1267 = vunpack.c.0.s8 %v1266
      %v1268 = vperm.slane %v1262, %v1267
      %v1270 = vunpack.c.l.s4 1934713408
      %v1271 = vunpack.c.0.s8 %v1270
      %v1272 = vperm.slane %v1264, %v1271
      %v1273 = vrot.slane %v1256, 4
      %v1274 = vsel %vm286, %v1273, %v1232
      %v1275 = vrot.slane %v1232, 4
      %v1276 = vsel %vm286, %v1256, %v1275
      %v1277 = vrot.slane %v1260, 4
      %v1278 = vsel %vm286, %v1277, %v1236
      %v1279 = vrot.slane %v1236, 4
      %v1280 = vsel %vm286, %v1260, %v1279
      %v1281 = vrot.slane %v1268, 4
      %v1282 = vsel %vm286, %v1281, %v1244
      %v1283 = vrot.slane %v1244, 4
      %v1284 = vsel %vm286, %v1268, %v1283
      %v1285 = vrot.slane %v1272, 4
      %v1286 = vsel %vm286, %v1285, %v1248
      %v1287 = vrot.slane %v1248, 4
      %v1288 = vsel %vm286, %v1272, %v1287
      %v1289 = vrot.slane %v942, 4
      %v1290 = vsel %vm286, %v1289, %v940
      %v1291 = vrot.slane %v940, 4
      %v1292 = vsel %vm286, %v942, %v1291
      %v1294 = vunpack.c.l.s4 1983009808
      %v1295 = vunpack.c.0.s8 %v1294
      %v1296 = vperm.slane %v1290, %v1295
      %v1298 = vunpack.c.l.s4 1983009808
      %v1299 = vunpack.c.0.s8 %v1298
      %v1300 = vperm.slane %v1292, %v1299
      %v1301 = vrot.slane %v943, 4
      %v1302 = vsel %vm286, %v1301, %v941
      %v1303 = vrot.slane %v941, 4
      %v1304 = vsel %vm286, %v943, %v1303
      %v1306 = vunpack.c.l.s4 1983009808
      %v1307 = vunpack.c.0.s8 %v1306
      %v1308 = vperm.slane %v1302, %v1307
      %v1310 = vunpack.c.l.s4 1983009808
      %v1311 = vunpack.c.0.s8 %v1310
      %v1312 = vperm.slane %v1304, %v1311
      %v1313 = vrot.slane %v946, 4
      %v1314 = vsel %vm286, %v1313, %v944
      %v1315 = vrot.slane %v944, 4
      %v1316 = vsel %vm286, %v946, %v1315
      %v1318 = vunpack.c.l.s4 1983009808
      %v1319 = vunpack.c.0.s8 %v1318
      %v1320 = vperm.slane %v1314, %v1319
      %v1322 = vunpack.c.l.s4 1983009808
      %v1323 = vunpack.c.0.s8 %v1322
      %v1324 = vperm.slane %v1316, %v1323
      %v1325 = vrot.slane %v947, 4
      %v1326 = vsel %vm286, %v1325, %v945
      %v1327 = vrot.slane %v945, 4
      %v1328 = vsel %vm286, %v947, %v1327
      %v1330 = vunpack.c.l.s4 1983009808
      %v1331 = vunpack.c.0.s8 %v1330
      %v1332 = vperm.slane %v1326, %v1331
      %v1334 = vunpack.c.l.s4 1983009808
      %v1335 = vunpack.c.0.s8 %v1334
      %v1336 = vperm.slane %v1328, %v1335
      %v1337 = vrot.slane %v1308, 4
      %v1338 = vsel %vm286, %v1337, %v1296
      %v1339 = vrot.slane %v1296, 4
      %v1340 = vsel %vm286, %v1308, %v1339
      %v1342 = vunpack.c.l.s4 1934713408
      %v1343 = vunpack.c.0.s8 %v1342
      %v1344 = vperm.slane %v1338, %v1343
      %v1346 = vunpack.c.l.s4 1934713408
      %v1347 = vunpack.c.0.s8 %v1346
      %v1348 = vperm.slane %v1340, %v1347
      %v1349 = vrot.slane %v1312, 4
      %v1350 = vsel %vm286, %v1349, %v1300
      %v1351 = vrot.slane %v1300, 4
      %v1352 = vsel %vm286, %v1312, %v1351
      %v1354 = vunpack.c.l.s4 1934713408
      %v1355 = vunpack.c.0.s8 %v1354
      %v1356 = vperm.slane %v1350, %v1355
      %v1358 = vunpack.c.l.s4 1934713408
      %v1359 = vunpack.c.0.s8 %v1358
      %v1360 = vperm.slane %v1352, %v1359
      %v1361 = vrot.slane %v1332, 4
      %v1362 = vsel %vm286, %v1361, %v1320
      %v1363 = vrot.slane %v1320, 4
      %v1364 = vsel %vm286, %v1332, %v1363
      %v1366 = vunpack.c.l.s4 1934713408
      %v1367 = vunpack.c.0.s8 %v1366
      %v1368 = vperm.slane %v1362, %v1367
      %v1370 = vunpack.c.l.s4 1934713408
      %v1371 = vunpack.c.0.s8 %v1370
      %v1372 = vperm.slane %v1364, %v1371
      %v1373 = vrot.slane %v1336, 4
      %v1374 = vsel %vm286, %v1373, %v1324
      %v1375 = vrot.slane %v1324, 4
      %v1376 = vsel %vm286, %v1336, %v1375
      %v1378 = vunpack.c.l.s4 1934713408
      %v1379 = vunpack.c.0.s8 %v1378
      %v1380 = vperm.slane %v1374, %v1379
      %v1382 = vunpack.c.l.s4 1934713408
      %v1383 = vunpack.c.0.s8 %v1382
      %v1384 = vperm.slane %v1376, %v1383
      %v1385 = vrot.slane %v1368, 4
      %v1386 = vsel %vm286, %v1385, %v1344
      %v1387 = vrot.slane %v1344, 4
      %v1388 = vsel %vm286, %v1368, %v1387
      %v1389 = vrot.slane %v1372, 4
      %v1390 = vsel %vm286, %v1389, %v1348
      %v1391 = vrot.slane %v1348, 4
      %v1392 = vsel %vm286, %v1372, %v1391
      %v1393 = vrot.slane %v1380, 4
      %v1394 = vsel %vm286, %v1393, %v1356
      %v1395 = vrot.slane %v1356, 4
      %v1396 = vsel %vm286, %v1380, %v1395
      %v1397 = vrot.slane %v1384, 4
      %v1398 = vsel %vm286, %v1397, %v1360
      %v1399 = vrot.slane %v1360, 4
      %v1400 = vsel %vm286, %v1384, %v1399
      %1403 = vrot.lane.b32.xlu0 %v1276, 16
      %v1404 = vpop.permute.xlu0 %1403
      %1405 = vrot.lane.b32.xlu0 %v1388, 16
      %v1406 = vpop.permute.xlu0 %1405
      %1411 = vrot.lane.b32.xlu0 %v1278, 32
      %v1412 = vpop.permute.xlu0 %1411
      %1413 = vrot.lane.b32.xlu0 %v1390, 32
      %v1414 = vpop.permute.xlu0 %1413
      %1419 = vrot.lane.b32.xlu0 %v1280, 48
      %v1420 = vpop.permute.xlu0 %1419
      %1421 = vrot.lane.b32.xlu0 %v1392, 48
      %v1422 = vpop.permute.xlu0 %1421
      %1427 = vrot.lane.b32.xlu0 %v1282, 64
      %v1428 = vpop.permute.xlu0 %1427
      %1429 = vrot.lane.b32.xlu0 %v1394, 64
      %v1430 = vpop.permute.xlu0 %1429
      %1435 = vrot.lane.b32.xlu0 %v1284, 80
      %v1436 = vpop.permute.xlu0 %1435
      %1437 = vrot.lane.b32.xlu0 %v1396, 80
      %v1438 = vpop.permute.xlu0 %1437
      %1443 = vrot.lane.b32.xlu0 %v1286, 96
      %v1444 = vpop.permute.xlu0 %1443
      %1445 = vrot.lane.b32.xlu0 %v1398, 96
      %v1446 = vpop.permute.xlu0 %1445
      %1451 = vrot.lane.b32.xlu0 %v1288, 112
      %v1452 = vpop.permute.xlu0 %1451
      %1453 = vrot.lane.b32.xlu0 %v1400, 112
      %v1454 = vpop.permute.xlu0 %1453
      %v1457 = vsel %vm566, %v1274, %v1404
      %v1458 = vsel %vm566, %v1386, %v1406
      %v1459 = vsel %vm569, %v1457, %v1412
      %v1460 = vsel %vm569, %v1458, %v1414
      %v1461 = vsel %vm572, %v1459, %v1420
      %v1462 = vsel %vm572, %v1460, %v1422
      %v1463 = vsel %vm575, %v1461, %v1428
      %v1464 = vsel %vm575, %v1462, %v1430
      %v1465 = vsel %vm578, %v1463, %v1436
      %v1466 = vsel %vm578, %v1464, %v1438
      %v1467 = vsel %vm581, %v1465, %v1444
      %v1468 = vsel %vm581, %v1466, %v1446
      %v1469 = vsel %vm584, %v1467, %v1452
      %v1470 = vsel %vm584, %v1468, %v1454
      %1471 = vmatpush.msra.mxu0 0.0
      %1472 = vmatpush.msra.mxu0 0.0
      %1473 = vmatpush.msra.mxu0 0.0
      %1474 = vmatpush.msra.mxu0 0.0
      %1475 = vmatpush.msra.mxu0 0.0
      %1476 = vmatpush.msra.mxu0 0.0
      %1477 = vmatpush.msra.mxu0 0.0
      %1478 = vmatpush.msra.mxu0 0.0
      %1479 = vmatpush.msra.mxu0 0.0
      %1480 = vmatpush.msra.mxu0 0.0
      %1481 = vmatpush.msra.mxu0 0.0
      %1482 = vmatpush.msra.mxu0 0.0
      %1483 = vmatpush.msra.mxu0 0.0
      %1484 = vmatpush.msra.mxu0 0.0
      %1485 = vmatpush.msra.mxu0 %v1470
      %1486 = vmatpush.msra.mxu0 %v1469
      %1487 = vmatmul.f32.gmra.mxu0 %v620
      %v1488 = vpop.f32.mrf.mxu0
      %v1489 = vadd.f32 0.0, %v1488
      %1490 = vmatmul.f32.gmra.mxu0 %v623
      %v1491 = vpop.f32.mrf.mxu0
      %v1492 = vadd.f32 0.0, %v1491
      %1493 = vdwg.mxu0
      %1496 = vrot.lane.b32.xlu0 %v1489, 112
      %v1497 = vpop.permute.xlu0 %1496
      %1498 = vrot.lane.b32.xlu0 %v1492, 112
      %v1499 = vpop.permute.xlu0 %1498
      %1502 = vrot.lane.b32.xlu0 %v1489, 96
      %v1503 = vpop.permute.xlu0 %1502
      %1504 = vrot.lane.b32.xlu0 %v1492, 96
      %v1505 = vpop.permute.xlu0 %1504
      %1508 = vrot.lane.b32.xlu0 %v1489, 80
      %v1509 = vpop.permute.xlu0 %1508
      %1510 = vrot.lane.b32.xlu0 %v1492, 80
      %v1511 = vpop.permute.xlu0 %1510
      %1514 = vrot.lane.b32.xlu0 %v1489, 64
      %v1515 = vpop.permute.xlu0 %1514
      %1516 = vrot.lane.b32.xlu0 %v1492, 64
      %v1517 = vpop.permute.xlu0 %1516
      %1520 = vrot.lane.b32.xlu0 %v1489, 48
      %v1521 = vpop.permute.xlu0 %1520
      %1522 = vrot.lane.b32.xlu0 %v1492, 48
      %v1523 = vpop.permute.xlu0 %1522
      %1526 = vrot.lane.b32.xlu0 %v1489, 32
      %v1527 = vpop.permute.xlu0 %1526
      %1528 = vrot.lane.b32.xlu0 %v1492, 32
      %v1529 = vpop.permute.xlu0 %1528
      %1532 = vrot.lane.b32.xlu0 %v1489, 16
      %v1533 = vpop.permute.xlu0 %1532
      %1534 = vrot.lane.b32.xlu0 %v1492, 16
      %v1535 = vpop.permute.xlu0 %1534
      %v1538 = vrot.slane %v1503, 4
      %v1539 = vsel %vm286, %v1538, %v1489
      %v1540 = vrot.slane %v1489, 4
      %v1541 = vsel %vm286, %v1503, %v1540
      %v1543 = vunpack.c.l.s4 1983009808
      %v1544 = vunpack.c.0.s8 %v1543
      %v1545 = vperm.slane %v1539, %v1544
      %v1547 = vunpack.c.l.s4 1983009808
      %v1548 = vunpack.c.0.s8 %v1547
      %v1549 = vperm.slane %v1541, %v1548
      %v1550 = vrot.slane %v1509, 4
      %v1551 = vsel %vm286, %v1550, %v1497
      %v1552 = vrot.slane %v1497, 4
      %v1553 = vsel %vm286, %v1509, %v1552
      %v1555 = vunpack.c.l.s4 1983009808
      %v1556 = vunpack.c.0.s8 %v1555
      %v1557 = vperm.slane %v1551, %v1556
      %v1559 = vunpack.c.l.s4 1983009808
      %v1560 = vunpack.c.0.s8 %v1559
      %v1561 = vperm.slane %v1553, %v1560
      %v1562 = vrot.slane %v1527, 4
      %v1563 = vsel %vm286, %v1562, %v1515
      %v1564 = vrot.slane %v1515, 4
      %v1565 = vsel %vm286, %v1527, %v1564
      %v1567 = vunpack.c.l.s4 1983009808
      %v1568 = vunpack.c.0.s8 %v1567
      %v1569 = vperm.slane %v1563, %v1568
      %v1571 = vunpack.c.l.s4 1983009808
      %v1572 = vunpack.c.0.s8 %v1571
      %v1573 = vperm.slane %v1565, %v1572
      %v1574 = vrot.slane %v1533, 4
      %v1575 = vsel %vm286, %v1574, %v1521
      %v1576 = vrot.slane %v1521, 4
      %v1577 = vsel %vm286, %v1533, %v1576
      %v1579 = vunpack.c.l.s4 1983009808
      %v1580 = vunpack.c.0.s8 %v1579
      %v1581 = vperm.slane %v1575, %v1580
      %v1583 = vunpack.c.l.s4 1983009808
      %v1584 = vunpack.c.0.s8 %v1583
      %v1585 = vperm.slane %v1577, %v1584
      %v1586 = vrot.slane %v1557, 4
      %v1587 = vsel %vm286, %v1586, %v1545
      %v1588 = vrot.slane %v1545, 4
      %v1589 = vsel %vm286, %v1557, %v1588
      %v1591 = vunpack.c.l.s4 1934713408
      %v1592 = vunpack.c.0.s8 %v1591
      %v1593 = vperm.slane %v1587, %v1592
      %v1595 = vunpack.c.l.s4 1934713408
      %v1596 = vunpack.c.0.s8 %v1595
      %v1597 = vperm.slane %v1589, %v1596
      %v1598 = vrot.slane %v1561, 4
      %v1599 = vsel %vm286, %v1598, %v1549
      %v1600 = vrot.slane %v1549, 4
      %v1601 = vsel %vm286, %v1561, %v1600
      %v1603 = vunpack.c.l.s4 1934713408
      %v1604 = vunpack.c.0.s8 %v1603
      %v1605 = vperm.slane %v1599, %v1604
      %v1607 = vunpack.c.l.s4 1934713408
      %v1608 = vunpack.c.0.s8 %v1607
      %v1609 = vperm.slane %v1601, %v1608
      %v1610 = vrot.slane %v1581, 4
      %v1611 = vsel %vm286, %v1610, %v1569
      %v1612 = vrot.slane %v1569, 4
      %v1613 = vsel %vm286, %v1581, %v1612
      %v1615 = vunpack.c.l.s4 1934713408
      %v1616 = vunpack.c.0.s8 %v1615
      %v1617 = vperm.slane %v1611, %v1616
      %v1619 = vunpack.c.l.s4 1934713408
      %v1620 = vunpack.c.0.s8 %v1619
      %v1621 = vperm.slane %v1613, %v1620
      %v1622 = vrot.slane %v1585, 4
      %v1623 = vsel %vm286, %v1622, %v1573
      %v1624 = vrot.slane %v1573, 4
      %v1625 = vsel %vm286, %v1585, %v1624
      %v1627 = vunpack.c.l.s4 1934713408
      %v1628 = vunpack.c.0.s8 %v1627
      %v1629 = vperm.slane %v1623, %v1628
      %v1631 = vunpack.c.l.s4 1934713408
      %v1632 = vunpack.c.0.s8 %v1631
      %v1633 = vperm.slane %v1625, %v1632
      %v1634 = vrot.slane %v1617, 4
      %v1635 = vsel %vm286, %v1634, %v1593
      %v1636 = vrot.slane %v1593, 4
      %v1637 = vsel %vm286, %v1617, %v1636
      %v1638 = vrot.slane %v1621, 4
      %v1639 = vsel %vm286, %v1638, %v1597
      %v1640 = vrot.slane %v1597, 4
      %v1641 = vsel %vm286, %v1621, %v1640
      %v1642 = vrot.slane %v1629, 4
      %v1643 = vsel %vm286, %v1642, %v1605
      %v1644 = vrot.slane %v1605, 4
      %v1645 = vsel %vm286, %v1629, %v1644
      %v1646 = vrot.slane %v1633, 4
      %v1647 = vsel %vm286, %v1646, %v1609
      %v1648 = vrot.slane %v1609, 4
      %v1649 = vsel %vm286, %v1633, %v1648
      %v1650 = vrot.slane %v1505, 4
      %v1651 = vsel %vm286, %v1650, %v1492
      %v1652 = vrot.slane %v1492, 4
      %v1653 = vsel %vm286, %v1505, %v1652
      %v1655 = vunpack.c.l.s4 1983009808
      %v1656 = vunpack.c.0.s8 %v1655
      %v1657 = vperm.slane %v1651, %v1656
      %v1659 = vunpack.c.l.s4 1983009808
      %v1660 = vunpack.c.0.s8 %v1659
      %v1661 = vperm.slane %v1653, %v1660
      %v1662 = vrot.slane %v1511, 4
      %v1663 = vsel %vm286, %v1662, %v1499
      %v1664 = vrot.slane %v1499, 4
      %v1665 = vsel %vm286, %v1511, %v1664
      %v1667 = vunpack.c.l.s4 1983009808
      %v1668 = vunpack.c.0.s8 %v1667
      %v1669 = vperm.slane %v1663, %v1668
      %v1671 = vunpack.c.l.s4 1983009808
      %v1672 = vunpack.c.0.s8 %v1671
      %v1673 = vperm.slane %v1665, %v1672
      %v1674 = vrot.slane %v1529, 4
      %v1675 = vsel %vm286, %v1674, %v1517
      %v1676 = vrot.slane %v1517, 4
      %v1677 = vsel %vm286, %v1529, %v1676
      %v1679 = vunpack.c.l.s4 1983009808
      %v1680 = vunpack.c.0.s8 %v1679
      %v1681 = vperm.slane %v1675, %v1680
      %v1683 = vunpack.c.l.s4 1983009808
      %v1684 = vunpack.c.0.s8 %v1683
      %v1685 = vperm.slane %v1677, %v1684
      %v1686 = vrot.slane %v1535, 4
      %v1687 = vsel %vm286, %v1686, %v1523
      %v1688 = vrot.slane %v1523, 4
      %v1689 = vsel %vm286, %v1535, %v1688
      %v1691 = vunpack.c.l.s4 1983009808
      %v1692 = vunpack.c.0.s8 %v1691
      %v1693 = vperm.slane %v1687, %v1692
      %v1695 = vunpack.c.l.s4 1983009808
      %v1696 = vunpack.c.0.s8 %v1695
      %v1697 = vperm.slane %v1689, %v1696
      %v1698 = vrot.slane %v1669, 4
      %v1699 = vsel %vm286, %v1698, %v1657
      %v1700 = vrot.slane %v1657, 4
      %v1701 = vsel %vm286, %v1669, %v1700
      %v1703 = vunpack.c.l.s4 1934713408
      %v1704 = vunpack.c.0.s8 %v1703
      %v1705 = vperm.slane %v1699, %v1704
      %v1707 = vunpack.c.l.s4 1934713408
      %v1708 = vunpack.c.0.s8 %v1707
      %v1709 = vperm.slane %v1701, %v1708
      %v1710 = vrot.slane %v1673, 4
      %v1711 = vsel %vm286, %v1710, %v1661
      %v1712 = vrot.slane %v1661, 4
      %v1713 = vsel %vm286, %v1673, %v1712
      %v1715 = vunpack.c.l.s4 1934713408
      %v1716 = vunpack.c.0.s8 %v1715
      %v1717 = vperm.slane %v1711, %v1716
      %v1719 = vunpack.c.l.s4 1934713408
      %v1720 = vunpack.c.0.s8 %v1719
      %v1721 = vperm.slane %v1713, %v1720
      %v1722 = vrot.slane %v1693, 4
      %v1723 = vsel %vm286, %v1722, %v1681
      %v1724 = vrot.slane %v1681, 4
      %v1725 = vsel %vm286, %v1693, %v1724
      %v1727 = vunpack.c.l.s4 1934713408
      %v1728 = vunpack.c.0.s8 %v1727
      %v1729 = vperm.slane %v1723, %v1728
      %v1731 = vunpack.c.l.s4 1934713408
      %v1732 = vunpack.c.0.s8 %v1731
      %v1733 = vperm.slane %v1725, %v1732
      %v1734 = vrot.slane %v1697, 4
      %v1735 = vsel %vm286, %v1734, %v1685
      %v1736 = vrot.slane %v1685, 4
      %v1737 = vsel %vm286, %v1697, %v1736
      %v1739 = vunpack.c.l.s4 1934713408
      %v1740 = vunpack.c.0.s8 %v1739
      %v1741 = vperm.slane %v1735, %v1740
      %v1743 = vunpack.c.l.s4 1934713408
      %v1744 = vunpack.c.0.s8 %v1743
      %v1745 = vperm.slane %v1737, %v1744
      %v1746 = vrot.slane %v1729, 4
      %v1747 = vsel %vm286, %v1746, %v1705
      %v1748 = vrot.slane %v1705, 4
      %v1749 = vsel %vm286, %v1729, %v1748
      %v1750 = vrot.slane %v1733, 4
      %v1751 = vsel %vm286, %v1750, %v1709
      %v1752 = vrot.slane %v1709, 4
      %v1753 = vsel %vm286, %v1733, %v1752
      %v1754 = vrot.slane %v1741, 4
      %v1755 = vsel %vm286, %v1754, %v1717
      %v1756 = vrot.slane %v1717, 4
      %v1757 = vsel %vm286, %v1741, %v1756
      %v1758 = vrot.slane %v1745, 4
      %v1759 = vsel %vm286, %v1758, %v1721
      %v1760 = vrot.slane %v1721, 4
      %v1761 = vsel %vm286, %v1745, %v1760
      %v1762 = vmul.f32 %v1635, 0.95
      %v1763 = vmul.f32 %v1637, 0.95
      %v1764 = vmul.f32 %v1639, 0.95
      %v1765 = vmul.f32 %v1641, 0.95
      %v1766 = vmul.f32 %v1643, 0.95
      %v1767 = vmul.f32 %v1645, 0.95
      %v1768 = vmul.f32 %v1647, 0.95
      %v1769 = vmul.f32 %v1649, 0.95
      %v1770 = vmul.f32 %v1747, 0.95
      %v1771 = vmul.f32 %v1749, 0.95
      %v1772 = vmul.f32 %v1751, 0.95
      %v1773 = vmul.f32 %v1753, 0.95
      %v1774 = vmul.f32 %v1755, 0.95
      %v1775 = vmul.f32 %v1757, 0.95
      %v1776 = vmul.f32 %v1759, 0.95
      %v1777 = vmul.f32 %v1761, 0.95
      %v1778 = vadd.f32 %v269, %v1762
      %v1779 = vadd.f32 %v270, %v1763
      %v1780 = vadd.f32 %v271, %v1764
      %v1781 = vadd.f32 %v272, %v1765
      %v1782 = vadd.f32 %v273, %v1766
      %v1783 = vadd.f32 %v274, %v1767
      %v1784 = vadd.f32 %v275, %v1768
      %v1785 = vadd.f32 %v276, %v1769
      %v1786 = vadd.f32 %v277, %v1770
      %v1787 = vadd.f32 %v278, %v1771
      %v1788 = vadd.f32 %v279, %v1772
      %v1789 = vadd.f32 %v280, %v1773
      %v1790 = vadd.f32 %v281, %v1774
      %v1791 = vadd.f32 %v282, %v1775
      %v1792 = vadd.f32 %v283, %v1776
      %v1793 = vadd.f32 %v284, %v1777
      %s1794 = scalar_lea.vmem %s2, 32
      %v1795 = vld [vmem:[%s1794] sm:$0xff]
      %v1796 = vld [vmem:[%s1794 + $0x8] sm:$0xff]
      %v1798 = vsel %vm566, %v1778, 0
      %v1801 = vsel %vm566, %v1779, 0
      %v1804 = vsel %vm566, %v1780, 0
      %v1807 = vsel %vm566, %v1781, 0
      %v1810 = vsel %vm566, %v1782, 0
      %v1813 = vsel %vm566, %v1783, 0
      %v1816 = vsel %vm566, %v1784, 0
      %v1819 = vsel %vm566, %v1785, 0
      %v1822 = vsel %vm566, %v1786, 0
      %v1825 = vsel %vm566, %v1787, 0
      %v1828 = vsel %vm566, %v1788, 0
      %v1831 = vsel %vm566, %v1789, 0
      %v1834 = vsel %vm566, %v1790, 0
      %v1837 = vsel %vm566, %v1791, 0
      %v1840 = vsel %vm566, %v1792, 0
      %v1843 = vsel %vm566, %v1793, 0
      %1845 = vmatpush.msra.mxu0 0.0
      %1846 = vmatpush.msra.mxu0 0.0
      %1847 = vmatpush.msra.mxu0 0.0
      %1848 = vmatpush.msra.mxu0 0.0
      %1849 = vmatpush.msra.mxu0 0.0
      %1850 = vmatpush.msra.mxu0 0.0
      %1851 = vmatpush.msra.mxu0 0.0
      %1852 = vmatpush.msra.mxu0 0.0
      %1853 = vmatpush.msra.mxu0 0.0
      %1854 = vmatpush.msra.mxu0 0.0
      %1855 = vmatpush.msra.mxu0 0.0
      %1856 = vmatpush.msra.mxu0 0.0
      %1857 = vmatpush.msra.mxu0 0.0
      %1858 = vmatpush.msra.mxu0 0.0
      %1859 = vmatpush.msra.mxu0 %v1796
      %1860 = vmatpush.msra.mxu0 %v1795
      %1861 = vmatmul.f32.gmra.mxu0 %v1798
      %v1862 = vpop.f32.mrf.mxu0
      %v1863 = vadd.f32 0.0, %v1862
      %1864 = vmatmul.f32.gmra.mxu0 %v1801
      %v1865 = vpop.f32.mrf.mxu0
      %v1866 = vadd.f32 0.0, %v1865
      %1867 = vmatmul.f32.gmra.mxu0 %v1804
      %v1868 = vpop.f32.mrf.mxu0
      %v1869 = vadd.f32 0.0, %v1868
      %1870 = vmatmul.f32.gmra.mxu0 %v1807
      %v1871 = vpop.f32.mrf.mxu0
      %v1872 = vadd.f32 0.0, %v1871
      %1873 = vmatmul.f32.gmra.mxu0 %v1810
      %v1874 = vpop.f32.mrf.mxu0
      %v1875 = vadd.f32 0.0, %v1874
      %1876 = vmatmul.f32.gmra.mxu0 %v1813
      %v1877 = vpop.f32.mrf.mxu0
      %v1878 = vadd.f32 0.0, %v1877
      %1879 = vmatmul.f32.gmra.mxu0 %v1816
      %v1880 = vpop.f32.mrf.mxu0
      %v1881 = vadd.f32 0.0, %v1880
      %1882 = vmatmul.f32.gmra.mxu0 %v1819
      %v1883 = vpop.f32.mrf.mxu0
      %v1884 = vadd.f32 0.0, %v1883
      %1885 = vmatmul.f32.gmra.mxu0 %v1822
      %v1886 = vpop.f32.mrf.mxu0
      %v1887 = vadd.f32 0.0, %v1886
      %1888 = vmatmul.f32.gmra.mxu0 %v1825
      %v1889 = vpop.f32.mrf.mxu0
      %v1890 = vadd.f32 0.0, %v1889
      %1891 = vmatmul.f32.gmra.mxu0 %v1828
      %v1892 = vpop.f32.mrf.mxu0
      %v1893 = vadd.f32 0.0, %v1892
      %1894 = vmatmul.f32.gmra.mxu0 %v1831
      %v1895 = vpop.f32.mrf.mxu0
      %v1896 = vadd.f32 0.0, %v1895
      %1897 = vmatmul.f32.gmra.mxu0 %v1834
      %v1898 = vpop.f32.mrf.mxu0
      %v1899 = vadd.f32 0.0, %v1898
      %1900 = vmatmul.f32.gmra.mxu0 %v1837
      %v1901 = vpop.f32.mrf.mxu0
      %v1902 = vadd.f32 0.0, %v1901
      %1903 = vmatmul.f32.gmra.mxu0 %v1840
      %v1904 = vpop.f32.mrf.mxu0
      %v1905 = vadd.f32 0.0, %v1904
      %1906 = vmatmul.f32.gmra.mxu0 %v1843
      %v1907 = vpop.f32.mrf.mxu0
      %v1908 = vadd.f32 0.0, %v1907
      %1909 = vdwg.mxu0
      %v1910 = vadd.f32 %v1130, %v1863
      %v1911 = vadd.f32 %v1133, %v1866
      %v1912 = vadd.f32 %v1136, %v1869
      %v1913 = vadd.f32 %v1139, %v1872
      %v1914 = vadd.f32 %v1142, %v1875
      %v1915 = vadd.f32 %v1145, %v1878
      %v1916 = vadd.f32 %v1148, %v1881
      %v1917 = vadd.f32 %v1151, %v1884
      %v1918 = vadd.f32 %v1154, %v1887
      %v1919 = vadd.f32 %v1157, %v1890
      %v1920 = vadd.f32 %v1160, %v1893
      %v1921 = vadd.f32 %v1163, %v1896
      %v1922 = vadd.f32 %v1166, %v1899
      %v1923 = vadd.f32 %v1169, %v1902
      %v1924 = vadd.f32 %v1172, %v1905
      %v1925 = vadd.f32 %v1175, %v1908
      %v1926 = vsel %vm566, %v261, -inf
      %v1927 = vsel %vm566, %v262, -inf
      %v1928 = vmax.f32 %v1926, %v1927
      %v1929 = vrot.slane %v1928, 4
      %v1930 = vmax.f32 %v1928, %v1929
      %v1931 = vrot.slane %v1930, 2
      %v1932 = vmax.f32 %v1930, %v1931
      %v1933 = vrot.slane %v1932, 1
      %v1934 = vmax.f32 %v1932, %v1933
      %v1935 = vsub.f32 %v261, %v1934
      %v1936 = vsub.f32 %v262, %v1934
      %v1937 = vmul.f32 %v1935, 1.442695
      %v1938 = vpow.pop %v1937
      %v1939 = vmul.f32 %v1936, 1.442695
      %v1940 = vpow.pop %v1939
      %v1941 = vsel %vm566, %v1938, 0.0
      %v1942 = vsel %vm566, %v1940, 0.0
      %v1943 = vadd.f32 %v1941, %v1942
      %v1944 = vrot.slane %v1943, 4
      %v1945 = vadd.f32 %v1943, %v1944
      %v1946 = vrot.slane %v1945, 2
      %v1947 = vadd.f32 %v1945, %v1946
      %v1948 = vrot.slane %v1947, 1
      %v1949 = vadd.f32 %v1947, %v1948
      %v1950 = vrcp.pop %v1949
      %v1951 = vmul.f32 %v1949, %v1950
      %v1952 = vsub.f32 1.0, %v1951
      %v1953 = vmul.f32 %v1950, %v1952
      %v1954 = vadd.f32 %v1950, %v1953
      %vm1955 = vweird.f32 %v1949
      %vm1956 = vweird.f32 %v1950
      %vm1957 = vmor %vm1955, %vm1956
      %v1958 = vsel %vm1957, %v1950, %v1954
      %v1959 = vand.u32 2147483647, %v1949
      %vm1960 = vcmp.eq.f32.partialorder %v1959, 8.507059e+37
      %v1961 = vand.u32 %v1949, 2147483648
      %v1962 = vor.u32 1.1754944e-38, %v1961
      %v1963 = vsel %vm1960, %v1962, %v1958
      %v1964 = vmul.f32 %v1938, %v1963
      %v1965 = vmul.f32 %v1940, %v1963
      %v1967 = vsel %vm566, %v1964, 0
      %v1970 = vsel %vm566, %v1965, 0
      %1972 = vmatpush.msra.mxu0 0.0
      %1973 = vmatpush.msra.mxu0 0.0
      %1974 = vmatpush.msra.mxu0 0.0
      %1975 = vmatpush.msra.mxu0 0.0
      %1976 = vmatpush.msra.mxu0 0.0
      %1977 = vmatpush.msra.mxu0 0.0
      %1978 = vmatpush.msra.mxu0 0.0
      %1979 = vmatpush.msra.mxu0 0.0
      %1980 = vmatpush.msra.mxu0 0.0
      %1981 = vmatpush.msra.mxu0 0.0
      %1982 = vmatpush.msra.mxu0 0.0
      %1983 = vmatpush.msra.mxu0 0.0
      %1984 = vmatpush.msra.mxu0 0.0
      %1985 = vmatpush.msra.mxu0 0.0
      %1986 = vmatpush.msra.mxu0 %v586
      %1987 = vmatpush.msra.mxu0 %v585
      %1988 = vmatmul.f32.gmra.mxu0 %v1967
      %v1989 = vpop.f32.mrf.mxu0
      %v1990 = vadd.f32 0.0, %v1989
      %1991 = vmatmul.f32.gmra.mxu0 %v1970
      %v1992 = vpop.f32.mrf.mxu0
      %v1993 = vadd.f32 0.0, %v1992
      %1994 = vdwg.mxu0
      %1997 = vrot.lane.b32.xlu0 %v1990, 112
      %v1998 = vpop.permute.xlu0 %1997
      %1999 = vrot.lane.b32.xlu0 %v1993, 112
      %v2000 = vpop.permute.xlu0 %1999
      %2003 = vrot.lane.b32.xlu0 %v1990, 96
      %v2004 = vpop.permute.xlu0 %2003
      %2005 = vrot.lane.b32.xlu0 %v1993, 96
      %v2006 = vpop.permute.xlu0 %2005
      %2009 = vrot.lane.b32.xlu0 %v1990, 80
      %v2010 = vpop.permute.xlu0 %2009
      %2011 = vrot.lane.b32.xlu0 %v1993, 80
      %v2012 = vpop.permute.xlu0 %2011
      %2015 = vrot.lane.b32.xlu0 %v1990, 64
      %v2016 = vpop.permute.xlu0 %2015
      %2017 = vrot.lane.b32.xlu0 %v1993, 64
      %v2018 = vpop.permute.xlu0 %2017
      %2021 = vrot.lane.b32.xlu0 %v1990, 48
      %v2022 = vpop.permute.xlu0 %2021
      %2023 = vrot.lane.b32.xlu0 %v1993, 48
      %v2024 = vpop.permute.xlu0 %2023
      %2027 = vrot.lane.b32.xlu0 %v1990, 32
      %v2028 = vpop.permute.xlu0 %2027
      %2029 = vrot.lane.b32.xlu0 %v1993, 32
      %v2030 = vpop.permute.xlu0 %2029
      %2033 = vrot.lane.b32.xlu0 %v1990, 16
      %v2034 = vpop.permute.xlu0 %2033
      %2035 = vrot.lane.b32.xlu0 %v1993, 16
      %v2036 = vpop.permute.xlu0 %2035
      %v2039 = vrot.slane %v2004, 4
      %v2040 = vsel %vm286, %v2039, %v1990
      %v2041 = vrot.slane %v1990, 4
      %v2042 = vsel %vm286, %v2004, %v2041
      %v2044 = vunpack.c.l.s4 1983009808
      %v2045 = vunpack.c.0.s8 %v2044
      %v2046 = vperm.slane %v2040, %v2045
      %v2048 = vunpack.c.l.s4 1983009808
      %v2049 = vunpack.c.0.s8 %v2048
      %v2050 = vperm.slane %v2042, %v2049
      %v2051 = vrot.slane %v2010, 4
      %v2052 = vsel %vm286, %v2051, %v1998
      %v2053 = vrot.slane %v1998, 4
      %v2054 = vsel %vm286, %v2010, %v2053
      %v2056 = vunpack.c.l.s4 1983009808
      %v2057 = vunpack.c.0.s8 %v2056
      %v2058 = vperm.slane %v2052, %v2057
      %v2060 = vunpack.c.l.s4 1983009808
      %v2061 = vunpack.c.0.s8 %v2060
      %v2062 = vperm.slane %v2054, %v2061
      %v2063 = vrot.slane %v2028, 4
      %v2064 = vsel %vm286, %v2063, %v2016
      %v2065 = vrot.slane %v2016, 4
      %v2066 = vsel %vm286, %v2028, %v2065
      %v2068 = vunpack.c.l.s4 1983009808
      %v2069 = vunpack.c.0.s8 %v2068
      %v2070 = vperm.slane %v2064, %v2069
      %v2072 = vunpack.c.l.s4 1983009808
      %v2073 = vunpack.c.0.s8 %v2072
      %v2074 = vperm.slane %v2066, %v2073
      %v2075 = vrot.slane %v2034, 4
      %v2076 = vsel %vm286, %v2075, %v2022
      %v2077 = vrot.slane %v2022, 4
      %v2078 = vsel %vm286, %v2034, %v2077
      %v2080 = vunpack.c.l.s4 1983009808
      %v2081 = vunpack.c.0.s8 %v2080
      %v2082 = vperm.slane %v2076, %v2081
      %v2084 = vunpack.c.l.s4 1983009808
      %v2085 = vunpack.c.0.s8 %v2084
      %v2086 = vperm.slane %v2078, %v2085
      %v2087 = vrot.slane %v2058, 4
      %v2088 = vsel %vm286, %v2087, %v2046
      %v2089 = vrot.slane %v2046, 4
      %v2090 = vsel %vm286, %v2058, %v2089
      %v2092 = vunpack.c.l.s4 1934713408
      %v2093 = vunpack.c.0.s8 %v2092
      %v2094 = vperm.slane %v2088, %v2093
      %v2096 = vunpack.c.l.s4 1934713408
      %v2097 = vunpack.c.0.s8 %v2096
      %v2098 = vperm.slane %v2090, %v2097
      %v2099 = vrot.slane %v2062, 4
      %v2100 = vsel %vm286, %v2099, %v2050
      %v2101 = vrot.slane %v2050, 4
      %v2102 = vsel %vm286, %v2062, %v2101
      %v2104 = vunpack.c.l.s4 1934713408
      %v2105 = vunpack.c.0.s8 %v2104
      %v2106 = vperm.slane %v2100, %v2105
      %v2108 = vunpack.c.l.s4 1934713408
      %v2109 = vunpack.c.0.s8 %v2108
      %v2110 = vperm.slane %v2102, %v2109
      %v2111 = vrot.slane %v2082, 4
      %v2112 = vsel %vm286, %v2111, %v2070
      %v2113 = vrot.slane %v2070, 4
      %v2114 = vsel %vm286, %v2082, %v2113
      %v2116 = vunpack.c.l.s4 1934713408
      %v2117 = vunpack.c.0.s8 %v2116
      %v2118 = vperm.slane %v2112, %v2117
      %v2120 = vunpack.c.l.s4 1934713408
      %v2121 = vunpack.c.0.s8 %v2120
      %v2122 = vperm.slane %v2114, %v2121
      %v2123 = vrot.slane %v2086, 4
      %v2124 = vsel %vm286, %v2123, %v2074
      %v2125 = vrot.slane %v2074, 4
      %v2126 = vsel %vm286, %v2086, %v2125
      %v2128 = vunpack.c.l.s4 1934713408
      %v2129 = vunpack.c.0.s8 %v2128
      %v2130 = vperm.slane %v2124, %v2129
      %v2132 = vunpack.c.l.s4 1934713408
      %v2133 = vunpack.c.0.s8 %v2132
      %v2134 = vperm.slane %v2126, %v2133
      %v2135 = vrot.slane %v2118, 4
      %v2136 = vsel %vm286, %v2135, %v2094
      %v2137 = vrot.slane %v2094, 4
      %v2138 = vsel %vm286, %v2118, %v2137
      %v2139 = vrot.slane %v2122, 4
      %v2140 = vsel %vm286, %v2139, %v2098
      %v2141 = vrot.slane %v2098, 4
      %v2142 = vsel %vm286, %v2122, %v2141
      %v2143 = vrot.slane %v2130, 4
      %v2144 = vsel %vm286, %v2143, %v2106
      %v2145 = vrot.slane %v2106, 4
      %v2146 = vsel %vm286, %v2130, %v2145
      %v2147 = vrot.slane %v2134, 4
      %v2148 = vsel %vm286, %v2147, %v2110
      %v2149 = vrot.slane %v2110, 4
      %v2150 = vsel %vm286, %v2134, %v2149
      %v2151 = vrot.slane %v2006, 4
      %v2152 = vsel %vm286, %v2151, %v1993
      %v2153 = vrot.slane %v1993, 4
      %v2154 = vsel %vm286, %v2006, %v2153
      %v2156 = vunpack.c.l.s4 1983009808
      %v2157 = vunpack.c.0.s8 %v2156
      %v2158 = vperm.slane %v2152, %v2157
      %v2160 = vunpack.c.l.s4 1983009808
      %v2161 = vunpack.c.0.s8 %v2160
      %v2162 = vperm.slane %v2154, %v2161
      %v2163 = vrot.slane %v2012, 4
      %v2164 = vsel %vm286, %v2163, %v2000
      %v2165 = vrot.slane %v2000, 4
      %v2166 = vsel %vm286, %v2012, %v2165
      %v2168 = vunpack.c.l.s4 1983009808
      %v2169 = vunpack.c.0.s8 %v2168
      %v2170 = vperm.slane %v2164, %v2169
      %v2172 = vunpack.c.l.s4 1983009808
      %v2173 = vunpack.c.0.s8 %v2172
      %v2174 = vperm.slane %v2166, %v2173
      %v2175 = vrot.slane %v2030, 4
      %v2176 = vsel %vm286, %v2175, %v2018
      %v2177 = vrot.slane %v2018, 4
      %v2178 = vsel %vm286, %v2030, %v2177
      %v2180 = vunpack.c.l.s4 1983009808
      %v2181 = vunpack.c.0.s8 %v2180
      %v2182 = vperm.slane %v2176, %v2181
      %v2184 = vunpack.c.l.s4 1983009808
      %v2185 = vunpack.c.0.s8 %v2184
      %v2186 = vperm.slane %v2178, %v2185
      %v2187 = vrot.slane %v2036, 4
      %v2188 = vsel %vm286, %v2187, %v2024
      %v2189 = vrot.slane %v2024, 4
      %v2190 = vsel %vm286, %v2036, %v2189
      %v2192 = vunpack.c.l.s4 1983009808
      %v2193 = vunpack.c.0.s8 %v2192
      %v2194 = vperm.slane %v2188, %v2193
      %v2196 = vunpack.c.l.s4 1983009808
      %v2197 = vunpack.c.0.s8 %v2196
      %v2198 = vperm.slane %v2190, %v2197
      %v2199 = vrot.slane %v2170, 4
      %v2200 = vsel %vm286, %v2199, %v2158
      %v2201 = vrot.slane %v2158, 4
      %v2202 = vsel %vm286, %v2170, %v2201
      %v2204 = vunpack.c.l.s4 1934713408
      %v2205 = vunpack.c.0.s8 %v2204
      %v2206 = vperm.slane %v2200, %v2205
      %v2208 = vunpack.c.l.s4 1934713408
      %v2209 = vunpack.c.0.s8 %v2208
      %v2210 = vperm.slane %v2202, %v2209
      %v2211 = vrot.slane %v2174, 4
      %v2212 = vsel %vm286, %v2211, %v2162
      %v2213 = vrot.slane %v2162, 4
      %v2214 = vsel %vm286, %v2174, %v2213
      %v2216 = vunpack.c.l.s4 1934713408
      %v2217 = vunpack.c.0.s8 %v2216
      %v2218 = vperm.slane %v2212, %v2217
      %v2220 = vunpack.c.l.s4 1934713408
      %v2221 = vunpack.c.0.s8 %v2220
      %v2222 = vperm.slane %v2214, %v2221
      %v2223 = vrot.slane %v2194, 4
      %v2224 = vsel %vm286, %v2223, %v2182
      %v2225 = vrot.slane %v2182, 4
      %v2226 = vsel %vm286, %v2194, %v2225
      %v2228 = vunpack.c.l.s4 1934713408
      %v2229 = vunpack.c.0.s8 %v2228
      %v2230 = vperm.slane %v2224, %v2229
      %v2232 = vunpack.c.l.s4 1934713408
      %v2233 = vunpack.c.0.s8 %v2232
      %v2234 = vperm.slane %v2226, %v2233
      %v2235 = vrot.slane %v2198, 4
      %v2236 = vsel %vm286, %v2235, %v2186
      %v2237 = vrot.slane %v2186, 4
      %v2238 = vsel %vm286, %v2198, %v2237
      %v2240 = vunpack.c.l.s4 1934713408
      %v2241 = vunpack.c.0.s8 %v2240
      %v2242 = vperm.slane %v2236, %v2241
      %v2244 = vunpack.c.l.s4 1934713408
      %v2245 = vunpack.c.0.s8 %v2244
      %v2246 = vperm.slane %v2238, %v2245
      %v2247 = vrot.slane %v2230, 4
      %v2248 = vsel %vm286, %v2247, %v2206
      %v2249 = vrot.slane %v2206, 4
      %v2250 = vsel %vm286, %v2230, %v2249
      %v2251 = vrot.slane %v2234, 4
      %v2252 = vsel %vm286, %v2251, %v2210
      %v2253 = vrot.slane %v2210, 4
      %v2254 = vsel %vm286, %v2234, %v2253
      %v2255 = vrot.slane %v2242, 4
      %v2256 = vsel %vm286, %v2255, %v2218
      %v2257 = vrot.slane %v2218, 4
      %v2258 = vsel %vm286, %v2242, %v2257
      %v2259 = vrot.slane %v2246, 4
      %v2260 = vsel %vm286, %v2259, %v2222
      %v2261 = vrot.slane %v2222, 4
      %v2262 = vsel %vm286, %v2246, %v2261
      %v2263 = vmul.f32 %v2136, 0.95
      %v2264 = vmul.f32 %v2138, 0.95
      %v2265 = vmul.f32 %v2140, 0.95
      %v2266 = vmul.f32 %v2142, 0.95
      %v2267 = vmul.f32 %v2144, 0.95
      %v2268 = vmul.f32 %v2146, 0.95
      %v2269 = vmul.f32 %v2148, 0.95
      %v2270 = vmul.f32 %v2150, 0.95
      %v2271 = vmul.f32 %v2248, 0.95
      %v2272 = vmul.f32 %v2250, 0.95
      %v2273 = vmul.f32 %v2252, 0.95
      %v2274 = vmul.f32 %v2254, 0.95
      %v2275 = vmul.f32 %v2256, 0.95
      %v2276 = vmul.f32 %v2258, 0.95
      %v2277 = vmul.f32 %v2260, 0.95
      %v2278 = vmul.f32 %v2262, 0.95
      %v2279 = vadd.f32 %v269, %v2263
      %v2280 = vadd.f32 %v270, %v2264
      %v2281 = vadd.f32 %v271, %v2265
      %v2282 = vadd.f32 %v272, %v2266
      %v2283 = vadd.f32 %v273, %v2267
      %v2284 = vadd.f32 %v274, %v2268
      %v2285 = vadd.f32 %v275, %v2269
      %v2286 = vadd.f32 %v276, %v2270
      %v2287 = vadd.f32 %v277, %v2271
      %v2288 = vadd.f32 %v278, %v2272
      %v2289 = vadd.f32 %v279, %v2273
      %v2290 = vadd.f32 %v280, %v2274
      %v2291 = vadd.f32 %v281, %v2275
      %v2292 = vadd.f32 %v282, %v2276
      %v2293 = vadd.f32 %v283, %v2277
      %v2294 = vadd.f32 %v284, %v2278
      %s2295 = scalar_lea.vmem %s3, 16
      %v2296 = vld [vmem:[%s2295] sm:$0xff]
      %v2297 = vld [vmem:[%s2295 + $0x8] sm:$0xff]
      %v2299 = vsel %vm566, %v2279, 0
      %v2302 = vsel %vm566, %v2280, 0
      %v2305 = vsel %vm566, %v2281, 0
      %v2308 = vsel %vm566, %v2282, 0
      %v2311 = vsel %vm566, %v2283, 0
      %v2314 = vsel %vm566, %v2284, 0
      %v2317 = vsel %vm566, %v2285, 0
      %v2320 = vsel %vm566, %v2286, 0
      %v2323 = vsel %vm566, %v2287, 0
      %v2326 = vsel %vm566, %v2288, 0
      %v2329 = vsel %vm566, %v2289, 0
      %v2332 = vsel %vm566, %v2290, 0
      %v2335 = vsel %vm566, %v2291, 0
      %v2338 = vsel %vm566, %v2292, 0
      %v2341 = vsel %vm566, %v2293, 0
      %v2344 = vsel %vm566, %v2294, 0
      %2346 = vmatpush.msra.mxu0 0.0
      %2347 = vmatpush.msra.mxu0 0.0
      %2348 = vmatpush.msra.mxu0 0.0
      %2349 = vmatpush.msra.mxu0 0.0
      %2350 = vmatpush.msra.mxu0 0.0
      %2351 = vmatpush.msra.mxu0 0.0
      %2352 = vmatpush.msra.mxu0 0.0
      %2353 = vmatpush.msra.mxu0 0.0
      %2354 = vmatpush.msra.mxu0 0.0
      %2355 = vmatpush.msra.mxu0 0.0
      %2356 = vmatpush.msra.mxu0 0.0
      %2357 = vmatpush.msra.mxu0 0.0
      %2358 = vmatpush.msra.mxu0 0.0
      %2359 = vmatpush.msra.mxu0 0.0
      %2360 = vmatpush.msra.mxu0 %v2297
      %2361 = vmatpush.msra.mxu0 %v2296
      %2362 = vmatmul.f32.gmra.mxu0 %v2299
      %v2363 = vpop.f32.mrf.mxu0
      %v2364 = vadd.f32 0.0, %v2363
      %2365 = vmatmul.f32.gmra.mxu0 %v2302
      %v2366 = vpop.f32.mrf.mxu0
      %v2367 = vadd.f32 0.0, %v2366
      %2368 = vmatmul.f32.gmra.mxu0 %v2305
      %v2369 = vpop.f32.mrf.mxu0
      %v2370 = vadd.f32 0.0, %v2369
      %2371 = vmatmul.f32.gmra.mxu0 %v2308
      %v2372 = vpop.f32.mrf.mxu0
      %v2373 = vadd.f32 0.0, %v2372
      %2374 = vmatmul.f32.gmra.mxu0 %v2311
      %v2375 = vpop.f32.mrf.mxu0
      %v2376 = vadd.f32 0.0, %v2375
      %2377 = vmatmul.f32.gmra.mxu0 %v2314
      %v2378 = vpop.f32.mrf.mxu0
      %v2379 = vadd.f32 0.0, %v2378
      %2380 = vmatmul.f32.gmra.mxu0 %v2317
      %v2381 = vpop.f32.mrf.mxu0
      %v2382 = vadd.f32 0.0, %v2381
      %2383 = vmatmul.f32.gmra.mxu0 %v2320
      %v2384 = vpop.f32.mrf.mxu0
      %v2385 = vadd.f32 0.0, %v2384
      %2386 = vmatmul.f32.gmra.mxu0 %v2323
      %v2387 = vpop.f32.mrf.mxu0
      %v2388 = vadd.f32 0.0, %v2387
      %2389 = vmatmul.f32.gmra.mxu0 %v2326
      %v2390 = vpop.f32.mrf.mxu0
      %v2391 = vadd.f32 0.0, %v2390
      %2392 = vmatmul.f32.gmra.mxu0 %v2329
      %v2393 = vpop.f32.mrf.mxu0
      %v2394 = vadd.f32 0.0, %v2393
      %2395 = vmatmul.f32.gmra.mxu0 %v2332
      %v2396 = vpop.f32.mrf.mxu0
      %v2397 = vadd.f32 0.0, %v2396
      %2398 = vmatmul.f32.gmra.mxu0 %v2335
      %v2399 = vpop.f32.mrf.mxu0
      %v2400 = vadd.f32 0.0, %v2399
      %2401 = vmatmul.f32.gmra.mxu0 %v2338
      %v2402 = vpop.f32.mrf.mxu0
      %v2403 = vadd.f32 0.0, %v2402
      %2404 = vmatmul.f32.gmra.mxu0 %v2341
      %v2405 = vpop.f32.mrf.mxu0
      %v2406 = vadd.f32 0.0, %v2405
      %2407 = vmatmul.f32.gmra.mxu0 %v2344
      %v2408 = vpop.f32.mrf.mxu0
      %v2409 = vadd.f32 0.0, %v2408
      %2410 = vdwg.mxu0
      %v2411 = vadd.f32 %v1910, %v2364
      %v2412 = vadd.f32 %v1911, %v2367
      %v2413 = vadd.f32 %v1912, %v2370
      %v2414 = vadd.f32 %v1913, %v2373
      %v2415 = vadd.f32 %v1914, %v2376
      %v2416 = vadd.f32 %v1915, %v2379
      %v2417 = vadd.f32 %v1916, %v2382
      %v2418 = vadd.f32 %v1917, %v2385
      %v2419 = vadd.f32 %v1918, %v2388
      %v2420 = vadd.f32 %v1919, %v2391
      %v2421 = vadd.f32 %v1920, %v2394
      %v2422 = vadd.f32 %v1921, %v2397
      %v2423 = vadd.f32 %v1922, %v2400
      %v2424 = vadd.f32 %v1923, %v2403
      %v2425 = vadd.f32 %v1924, %v2406
      %v2426 = vadd.f32 %v1925, %v2409
      %v2427 = vrot.slane %v2281, 4
      %v2428 = vsel %vm286, %v2427, %v2279
      %v2429 = vrot.slane %v2279, 4
      %v2430 = vsel %vm286, %v2281, %v2429
      %v2432 = vunpack.c.l.s4 1983009808
      %v2433 = vunpack.c.0.s8 %v2432
      %v2434 = vperm.slane %v2428, %v2433
      %v2436 = vunpack.c.l.s4 1983009808
      %v2437 = vunpack.c.0.s8 %v2436
      %v2438 = vperm.slane %v2430, %v2437
      %v2439 = vrot.slane %v2282, 4
      %v2440 = vsel %vm286, %v2439, %v2280
      %v2441 = vrot.slane %v2280, 4
      %v2442 = vsel %vm286, %v2282, %v2441
      %v2444 = vunpack.c.l.s4 1983009808
      %v2445 = vunpack.c.0.s8 %v2444
      %v2446 = vperm.slane %v2440, %v2445
      %v2448 = vunpack.c.l.s4 1983009808
      %v2449 = vunpack.c.0.s8 %v2448
      %v2450 = vperm.slane %v2442, %v2449
      %v2451 = vrot.slane %v2285, 4
      %v2452 = vsel %vm286, %v2451, %v2283
      %v2453 = vrot.slane %v2283, 4
      %v2454 = vsel %vm286, %v2285, %v2453
      %v2456 = vunpack.c.l.s4 1983009808
      %v2457 = vunpack.c.0.s8 %v2456
      %v2458 = vperm.slane %v2452, %v2457
      %v2460 = vunpack.c.l.s4 1983009808
      %v2461 = vunpack.c.0.s8 %v2460
      %v2462 = vperm.slane %v2454, %v2461
      %v2463 = vrot.slane %v2286, 4
      %v2464 = vsel %vm286, %v2463, %v2284
      %v2465 = vrot.slane %v2284, 4
      %v2466 = vsel %vm286, %v2286, %v2465
      %v2468 = vunpack.c.l.s4 1983009808
      %v2469 = vunpack.c.0.s8 %v2468
      %v2470 = vperm.slane %v2464, %v2469
      %v2472 = vunpack.c.l.s4 1983009808
      %v2473 = vunpack.c.0.s8 %v2472
      %v2474 = vperm.slane %v2466, %v2473
      %v2475 = vrot.slane %v2446, 4
      %v2476 = vsel %vm286, %v2475, %v2434
      %v2477 = vrot.slane %v2434, 4
      %v2478 = vsel %vm286, %v2446, %v2477
      %v2480 = vunpack.c.l.s4 1934713408
      %v2481 = vunpack.c.0.s8 %v2480
      %v2482 = vperm.slane %v2476, %v2481
      %v2484 = vunpack.c.l.s4 1934713408
      %v2485 = vunpack.c.0.s8 %v2484
      %v2486 = vperm.slane %v2478, %v2485
      %v2487 = vrot.slane %v2450, 4
      %v2488 = vsel %vm286, %v2487, %v2438
      %v2489 = vrot.slane %v2438, 4
      %v2490 = vsel %vm286, %v2450, %v2489
      %v2492 = vunpack.c.l.s4 1934713408
      %v2493 = vunpack.c.0.s8 %v2492
      %v2494 = vperm.slane %v2488, %v2493
      %v2496 = vunpack.c.l.s4 1934713408
      %v2497 = vunpack.c.0.s8 %v2496
      %v2498 = vperm.slane %v2490, %v2497
      %v2499 = vrot.slane %v2470, 4
      %v2500 = vsel %vm286, %v2499, %v2458
      %v2501 = vrot.slane %v2458, 4
      %v2502 = vsel %vm286, %v2470, %v2501
      %v2504 = vunpack.c.l.s4 1934713408
      %v2505 = vunpack.c.0.s8 %v2504
      %v2506 = vperm.slane %v2500, %v2505
      %v2508 = vunpack.c.l.s4 1934713408
      %v2509 = vunpack.c.0.s8 %v2508
      %v2510 = vperm.slane %v2502, %v2509
      %v2511 = vrot.slane %v2474, 4
      %v2512 = vsel %vm286, %v2511, %v2462
      %v2513 = vrot.slane %v2462, 4
      %v2514 = vsel %vm286, %v2474, %v2513
      %v2516 = vunpack.c.l.s4 1934713408
      %v2517 = vunpack.c.0.s8 %v2516
      %v2518 = vperm.slane %v2512, %v2517
      %v2520 = vunpack.c.l.s4 1934713408
      %v2521 = vunpack.c.0.s8 %v2520
      %v2522 = vperm.slane %v2514, %v2521
      %v2523 = vrot.slane %v2506, 4
      %v2524 = vsel %vm286, %v2523, %v2482
      %v2525 = vrot.slane %v2482, 4
      %v2526 = vsel %vm286, %v2506, %v2525
      %v2527 = vrot.slane %v2510, 4
      %v2528 = vsel %vm286, %v2527, %v2486
      %v2529 = vrot.slane %v2486, 4
      %v2530 = vsel %vm286, %v2510, %v2529
      %v2531 = vrot.slane %v2518, 4
      %v2532 = vsel %vm286, %v2531, %v2494
      %v2533 = vrot.slane %v2494, 4
      %v2534 = vsel %vm286, %v2518, %v2533
      %v2535 = vrot.slane %v2522, 4
      %v2536 = vsel %vm286, %v2535, %v2498
      %v2537 = vrot.slane %v2498, 4
      %v2538 = vsel %vm286, %v2522, %v2537
      %v2539 = vrot.slane %v2289, 4
      %v2540 = vsel %vm286, %v2539, %v2287
      %v2541 = vrot.slane %v2287, 4
      %v2542 = vsel %vm286, %v2289, %v2541
      %v2544 = vunpack.c.l.s4 1983009808
      %v2545 = vunpack.c.0.s8 %v2544
      %v2546 = vperm.slane %v2540, %v2545
      %v2548 = vunpack.c.l.s4 1983009808
      %v2549 = vunpack.c.0.s8 %v2548
      %v2550 = vperm.slane %v2542, %v2549
      %v2551 = vrot.slane %v2290, 4
      %v2552 = vsel %vm286, %v2551, %v2288
      %v2553 = vrot.slane %v2288, 4
      %v2554 = vsel %vm286, %v2290, %v2553
      %v2556 = vunpack.c.l.s4 1983009808
      %v2557 = vunpack.c.0.s8 %v2556
      %v2558 = vperm.slane %v2552, %v2557
      %v2560 = vunpack.c.l.s4 1983009808
      %v2561 = vunpack.c.0.s8 %v2560
      %v2562 = vperm.slane %v2554, %v2561
      %v2563 = vrot.slane %v2293, 4
      %v2564 = vsel %vm286, %v2563, %v2291
      %v2565 = vrot.slane %v2291, 4
      %v2566 = vsel %vm286, %v2293, %v2565
      %v2568 = vunpack.c.l.s4 1983009808
      %v2569 = vunpack.c.0.s8 %v2568
      %v2570 = vperm.slane %v2564, %v2569
      %v2572 = vunpack.c.l.s4 1983009808
      %v2573 = vunpack.c.0.s8 %v2572
      %v2574 = vperm.slane %v2566, %v2573
      %v2575 = vrot.slane %v2294, 4
      %v2576 = vsel %vm286, %v2575, %v2292
      %v2577 = vrot.slane %v2292, 4
      %v2578 = vsel %vm286, %v2294, %v2577
      %v2580 = vunpack.c.l.s4 1983009808
      %v2581 = vunpack.c.0.s8 %v2580
      %v2582 = vperm.slane %v2576, %v2581
      %v2584 = vunpack.c.l.s4 1983009808
      %v2585 = vunpack.c.0.s8 %v2584
      %v2586 = vperm.slane %v2578, %v2585
      %v2587 = vrot.slane %v2558, 4
      %v2588 = vsel %vm286, %v2587, %v2546
      %v2589 = vrot.slane %v2546, 4
      %v2590 = vsel %vm286, %v2558, %v2589
      %v2592 = vunpack.c.l.s4 1934713408
      %v2593 = vunpack.c.0.s8 %v2592
      %v2594 = vperm.slane %v2588, %v2593
      %v2596 = vunpack.c.l.s4 1934713408
      %v2597 = vunpack.c.0.s8 %v2596
      %v2598 = vperm.slane %v2590, %v2597
      %v2599 = vrot.slane %v2562, 4
      %v2600 = vsel %vm286, %v2599, %v2550
      %v2601 = vrot.slane %v2550, 4
      %v2602 = vsel %vm286, %v2562, %v2601
      %v2604 = vunpack.c.l.s4 1934713408
      %v2605 = vunpack.c.0.s8 %v2604
      %v2606 = vperm.slane %v2600, %v2605
      %v2608 = vunpack.c.l.s4 1934713408
      %v2609 = vunpack.c.0.s8 %v2608
      %v2610 = vperm.slane %v2602, %v2609
      %v2611 = vrot.slane %v2582, 4
      %v2612 = vsel %vm286, %v2611, %v2570
      %v2613 = vrot.slane %v2570, 4
      %v2614 = vsel %vm286, %v2582, %v2613
      %v2616 = vunpack.c.l.s4 1934713408
      %v2617 = vunpack.c.0.s8 %v2616
      %v2618 = vperm.slane %v2612, %v2617
      %v2620 = vunpack.c.l.s4 1934713408
      %v2621 = vunpack.c.0.s8 %v2620
      %v2622 = vperm.slane %v2614, %v2621
      %v2623 = vrot.slane %v2586, 4
      %v2624 = vsel %vm286, %v2623, %v2574
      %v2625 = vrot.slane %v2574, 4
      %v2626 = vsel %vm286, %v2586, %v2625
      %v2628 = vunpack.c.l.s4 1934713408
      %v2629 = vunpack.c.0.s8 %v2628
      %v2630 = vperm.slane %v2624, %v2629
      %v2632 = vunpack.c.l.s4 1934713408
      %v2633 = vunpack.c.0.s8 %v2632
      %v2634 = vperm.slane %v2626, %v2633
      %v2635 = vrot.slane %v2618, 4
      %v2636 = vsel %vm286, %v2635, %v2594
      %v2637 = vrot.slane %v2594, 4
      %v2638 = vsel %vm286, %v2618, %v2637
      %v2639 = vrot.slane %v2622, 4
      %v2640 = vsel %vm286, %v2639, %v2598
      %v2641 = vrot.slane %v2598, 4
      %v2642 = vsel %vm286, %v2622, %v2641
      %v2643 = vrot.slane %v2630, 4
      %v2644 = vsel %vm286, %v2643, %v2606
      %v2645 = vrot.slane %v2606, 4
      %v2646 = vsel %vm286, %v2630, %v2645
      %v2647 = vrot.slane %v2634, 4
      %v2648 = vsel %vm286, %v2647, %v2610
      %v2649 = vrot.slane %v2610, 4
      %v2650 = vsel %vm286, %v2634, %v2649
      %2653 = vrot.lane.b32.xlu0 %v2526, 16
      %v2654 = vpop.permute.xlu0 %2653
      %2655 = vrot.lane.b32.xlu0 %v2638, 16
      %v2656 = vpop.permute.xlu0 %2655
      %2661 = vrot.lane.b32.xlu0 %v2528, 32
      %v2662 = vpop.permute.xlu0 %2661
      %2663 = vrot.lane.b32.xlu0 %v2640, 32
      %v2664 = vpop.permute.xlu0 %2663
      %2669 = vrot.lane.b32.xlu0 %v2530, 48
      %v2670 = vpop.permute.xlu0 %2669
      %2671 = vrot.lane.b32.xlu0 %v2642, 48
      %v2672 = vpop.permute.xlu0 %2671
      %2677 = vrot.lane.b32.xlu0 %v2532, 64
      %v2678 = vpop.permute.xlu0 %2677
      %2679 = vrot.lane.b32.xlu0 %v2644, 64
      %v2680 = vpop.permute.xlu0 %2679
      %2685 = vrot.lane.b32.xlu0 %v2534, 80
      %v2686 = vpop.permute.xlu0 %2685
      %2687 = vrot.lane.b32.xlu0 %v2646, 80
      %v2688 = vpop.permute.xlu0 %2687
      %2693 = vrot.lane.b32.xlu0 %v2536, 96
      %v2694 = vpop.permute.xlu0 %2693
      %2695 = vrot.lane.b32.xlu0 %v2648, 96
      %v2696 = vpop.permute.xlu0 %2695
      %2701 = vrot.lane.b32.xlu0 %v2538, 112
      %v2702 = vpop.permute.xlu0 %2701
      %2703 = vrot.lane.b32.xlu0 %v2650, 112
      %v2704 = vpop.permute.xlu0 %2703
      %v2707 = vsel %vm566, %v2524, %v2654
      %v2708 = vsel %vm566, %v2636, %v2656
      %v2709 = vsel %vm569, %v2707, %v2662
      %v2710 = vsel %vm569, %v2708, %v2664
      %v2711 = vsel %vm572, %v2709, %v2670
      %v2712 = vsel %vm572, %v2710, %v2672
      %v2713 = vsel %vm575, %v2711, %v2678
      %v2714 = vsel %vm575, %v2712, %v2680
      %v2715 = vsel %vm578, %v2713, %v2686
      %v2716 = vsel %vm578, %v2714, %v2688
      %v2717 = vsel %vm581, %v2715, %v2694
      %v2718 = vsel %vm581, %v2716, %v2696
      %v2719 = vsel %vm584, %v2717, %v2702
      %v2720 = vsel %vm584, %v2718, %v2704
      %2721 = vmatpush.msra.mxu0 0.0
      %2722 = vmatpush.msra.mxu0 0.0
      %2723 = vmatpush.msra.mxu0 0.0
      %2724 = vmatpush.msra.mxu0 0.0
      %2725 = vmatpush.msra.mxu0 0.0
      %2726 = vmatpush.msra.mxu0 0.0
      %2727 = vmatpush.msra.mxu0 0.0
      %2728 = vmatpush.msra.mxu0 0.0
      %2729 = vmatpush.msra.mxu0 0.0
      %2730 = vmatpush.msra.mxu0 0.0
      %2731 = vmatpush.msra.mxu0 0.0
      %2732 = vmatpush.msra.mxu0 0.0
      %2733 = vmatpush.msra.mxu0 0.0
      %2734 = vmatpush.msra.mxu0 0.0
      %2735 = vmatpush.msra.mxu0 %v2720
      %2736 = vmatpush.msra.mxu0 %v2719
      %2737 = vmatmul.f32.gmra.mxu0 %v1967
      %v2738 = vpop.f32.mrf.mxu0
      %v2739 = vadd.f32 0.0, %v2738
      %2740 = vmatmul.f32.gmra.mxu0 %v1970
      %v2741 = vpop.f32.mrf.mxu0
      %v2742 = vadd.f32 0.0, %v2741
      %2743 = vdwg.mxu0
      %2746 = vrot.lane.b32.xlu0 %v2739, 112
      %v2747 = vpop.permute.xlu0 %2746
      %2748 = vrot.lane.b32.xlu0 %v2742, 112
      %v2749 = vpop.permute.xlu0 %2748
      %2752 = vrot.lane.b32.xlu0 %v2739, 96
      %v2753 = vpop.permute.xlu0 %2752
      %2754 = vrot.lane.b32.xlu0 %v2742, 96
      %v2755 = vpop.permute.xlu0 %2754
      %2758 = vrot.lane.b32.xlu0 %v2739, 80
      %v2759 = vpop.permute.xlu0 %2758
      %2760 = vrot.lane.b32.xlu0 %v2742, 80
      %v2761 = vpop.permute.xlu0 %2760
      %2764 = vrot.lane.b32.xlu0 %v2739, 64
      %v2765 = vpop.permute.xlu0 %2764
      %2766 = vrot.lane.b32.xlu0 %v2742, 64
      %v2767 = vpop.permute.xlu0 %2766
      %2770 = vrot.lane.b32.xlu0 %v2739, 48
      %v2771 = vpop.permute.xlu0 %2770
      %2772 = vrot.lane.b32.xlu0 %v2742, 48
      %v2773 = vpop.permute.xlu0 %2772
      %2776 = vrot.lane.b32.xlu0 %v2739, 32
      %v2777 = vpop.permute.xlu0 %2776
      %2778 = vrot.lane.b32.xlu0 %v2742, 32
      %v2779 = vpop.permute.xlu0 %2778
      %2782 = vrot.lane.b32.xlu0 %v2739, 16
      %v2783 = vpop.permute.xlu0 %2782
      %2784 = vrot.lane.b32.xlu0 %v2742, 16
      %v2785 = vpop.permute.xlu0 %2784
      %v2788 = vrot.slane %v2753, 4
      %v2789 = vsel %vm286, %v2788, %v2739
      %v2790 = vrot.slane %v2739, 4
      %v2791 = vsel %vm286, %v2753, %v2790
      %v2793 = vunpack.c.l.s4 1983009808
      %v2794 = vunpack.c.0.s8 %v2793
      %v2795 = vperm.slane %v2789, %v2794
      %v2797 = vunpack.c.l.s4 1983009808
      %v2798 = vunpack.c.0.s8 %v2797
      %v2799 = vperm.slane %v2791, %v2798
      %v2800 = vrot.slane %v2759, 4
      %v2801 = vsel %vm286, %v2800, %v2747
      %v2802 = vrot.slane %v2747, 4
      %v2803 = vsel %vm286, %v2759, %v2802
      %v2805 = vunpack.c.l.s4 1983009808
      %v2806 = vunpack.c.0.s8 %v2805
      %v2807 = vperm.slane %v2801, %v2806
      %v2809 = vunpack.c.l.s4 1983009808
      %v2810 = vunpack.c.0.s8 %v2809
      %v2811 = vperm.slane %v2803, %v2810
      %v2812 = vrot.slane %v2777, 4
      %v2813 = vsel %vm286, %v2812, %v2765
      %v2814 = vrot.slane %v2765, 4
      %v2815 = vsel %vm286, %v2777, %v2814
      %v2817 = vunpack.c.l.s4 1983009808
      %v2818 = vunpack.c.0.s8 %v2817
      %v2819 = vperm.slane %v2813, %v2818
      %v2821 = vunpack.c.l.s4 1983009808
      %v2822 = vunpack.c.0.s8 %v2821
      %v2823 = vperm.slane %v2815, %v2822
      %v2824 = vrot.slane %v2783, 4
      %v2825 = vsel %vm286, %v2824, %v2771
      %v2826 = vrot.slane %v2771, 4
      %v2827 = vsel %vm286, %v2783, %v2826
      %v2829 = vunpack.c.l.s4 1983009808
      %v2830 = vunpack.c.0.s8 %v2829
      %v2831 = vperm.slane %v2825, %v2830
      %v2833 = vunpack.c.l.s4 1983009808
      %v2834 = vunpack.c.0.s8 %v2833
      %v2835 = vperm.slane %v2827, %v2834
      %v2836 = vrot.slane %v2807, 4
      %v2837 = vsel %vm286, %v2836, %v2795
      %v2838 = vrot.slane %v2795, 4
      %v2839 = vsel %vm286, %v2807, %v2838
      %v2841 = vunpack.c.l.s4 1934713408
      %v2842 = vunpack.c.0.s8 %v2841
      %v2843 = vperm.slane %v2837, %v2842
      %v2845 = vunpack.c.l.s4 1934713408
      %v2846 = vunpack.c.0.s8 %v2845
      %v2847 = vperm.slane %v2839, %v2846
      %v2848 = vrot.slane %v2811, 4
      %v2849 = vsel %vm286, %v2848, %v2799
      %v2850 = vrot.slane %v2799, 4
      %v2851 = vsel %vm286, %v2811, %v2850
      %v2853 = vunpack.c.l.s4 1934713408
      %v2854 = vunpack.c.0.s8 %v2853
      %v2855 = vperm.slane %v2849, %v2854
      %v2857 = vunpack.c.l.s4 1934713408
      %v2858 = vunpack.c.0.s8 %v2857
      %v2859 = vperm.slane %v2851, %v2858
      %v2860 = vrot.slane %v2831, 4
      %v2861 = vsel %vm286, %v2860, %v2819
      %v2862 = vrot.slane %v2819, 4
      %v2863 = vsel %vm286, %v2831, %v2862
      %v2865 = vunpack.c.l.s4 1934713408
      %v2866 = vunpack.c.0.s8 %v2865
      %v2867 = vperm.slane %v2861, %v2866
      %v2869 = vunpack.c.l.s4 1934713408
      %v2870 = vunpack.c.0.s8 %v2869
      %v2871 = vperm.slane %v2863, %v2870
      %v2872 = vrot.slane %v2835, 4
      %v2873 = vsel %vm286, %v2872, %v2823
      %v2874 = vrot.slane %v2823, 4
      %v2875 = vsel %vm286, %v2835, %v2874
      %v2877 = vunpack.c.l.s4 1934713408
      %v2878 = vunpack.c.0.s8 %v2877
      %v2879 = vperm.slane %v2873, %v2878
      %v2881 = vunpack.c.l.s4 1934713408
      %v2882 = vunpack.c.0.s8 %v2881
      %v2883 = vperm.slane %v2875, %v2882
      %v2884 = vrot.slane %v2867, 4
      %v2885 = vsel %vm286, %v2884, %v2843
      %v2886 = vrot.slane %v2843, 4
      %v2887 = vsel %vm286, %v2867, %v2886
      %v2888 = vrot.slane %v2871, 4
      %v2889 = vsel %vm286, %v2888, %v2847
      %v2890 = vrot.slane %v2847, 4
      %v2891 = vsel %vm286, %v2871, %v2890
      %v2892 = vrot.slane %v2879, 4
      %v2893 = vsel %vm286, %v2892, %v2855
      %v2894 = vrot.slane %v2855, 4
      %v2895 = vsel %vm286, %v2879, %v2894
      %v2896 = vrot.slane %v2883, 4
      %v2897 = vsel %vm286, %v2896, %v2859
      %v2898 = vrot.slane %v2859, 4
      %v2899 = vsel %vm286, %v2883, %v2898
      %v2900 = vrot.slane %v2755, 4
      %v2901 = vsel %vm286, %v2900, %v2742
      %v2902 = vrot.slane %v2742, 4
      %v2903 = vsel %vm286, %v2755, %v2902
      %v2905 = vunpack.c.l.s4 1983009808
      %v2906 = vunpack.c.0.s8 %v2905
      %v2907 = vperm.slane %v2901, %v2906
      %v2909 = vunpack.c.l.s4 1983009808
      %v2910 = vunpack.c.0.s8 %v2909
      %v2911 = vperm.slane %v2903, %v2910
      %v2912 = vrot.slane %v2761, 4
      %v2913 = vsel %vm286, %v2912, %v2749
      %v2914 = vrot.slane %v2749, 4
      %v2915 = vsel %vm286, %v2761, %v2914
      %v2917 = vunpack.c.l.s4 1983009808
      %v2918 = vunpack.c.0.s8 %v2917
      %v2919 = vperm.slane %v2913, %v2918
      %v2921 = vunpack.c.l.s4 1983009808
      %v2922 = vunpack.c.0.s8 %v2921
      %v2923 = vperm.slane %v2915, %v2922
      %v2924 = vrot.slane %v2779, 4
      %v2925 = vsel %vm286, %v2924, %v2767
      %v2926 = vrot.slane %v2767, 4
      %v2927 = vsel %vm286, %v2779, %v2926
      %v2929 = vunpack.c.l.s4 1983009808
      %v2930 = vunpack.c.0.s8 %v2929
      %v2931 = vperm.slane %v2925, %v2930
      %v2933 = vunpack.c.l.s4 1983009808
      %v2934 = vunpack.c.0.s8 %v2933
      %v2935 = vperm.slane %v2927, %v2934
      %v2936 = vrot.slane %v2785, 4
      %v2937 = vsel %vm286, %v2936, %v2773
      %v2938 = vrot.slane %v2773, 4
      %v2939 = vsel %vm286, %v2785, %v2938
      %v2941 = vunpack.c.l.s4 1983009808
      %v2942 = vunpack.c.0.s8 %v2941
      %v2943 = vperm.slane %v2937, %v2942
      %v2945 = vunpack.c.l.s4 1983009808
      %v2946 = vunpack.c.0.s8 %v2945
      %v2947 = vperm.slane %v2939, %v2946
      %v2948 = vrot.slane %v2919, 4
      %v2949 = vsel %vm286, %v2948, %v2907
      %v2950 = vrot.slane %v2907, 4
      %v2951 = vsel %vm286, %v2919, %v2950
      %v2953 = vunpack.c.l.s4 1934713408
      %v2954 = vunpack.c.0.s8 %v2953
      %v2955 = vperm.slane %v2949, %v2954
      %v2957 = vunpack.c.l.s4 1934713408
      %v2958 = vunpack.c.0.s8 %v2957
      %v2959 = vperm.slane %v2951, %v2958
      %v2960 = vrot.slane %v2923, 4
      %v2961 = vsel %vm286, %v2960, %v2911
      %v2962 = vrot.slane %v2911, 4
      %v2963 = vsel %vm286, %v2923, %v2962
      %v2965 = vunpack.c.l.s4 1934713408
      %v2966 = vunpack.c.0.s8 %v2965
      %v2967 = vperm.slane %v2961, %v2966
      %v2969 = vunpack.c.l.s4 1934713408
      %v2970 = vunpack.c.0.s8 %v2969
      %v2971 = vperm.slane %v2963, %v2970
      %v2972 = vrot.slane %v2943, 4
      %v2973 = vsel %vm286, %v2972, %v2931
      %v2974 = vrot.slane %v2931, 4
      %v2975 = vsel %vm286, %v2943, %v2974
      %v2977 = vunpack.c.l.s4 1934713408
      %v2978 = vunpack.c.0.s8 %v2977
      %v2979 = vperm.slane %v2973, %v2978
      %v2981 = vunpack.c.l.s4 1934713408
      %v2982 = vunpack.c.0.s8 %v2981
      %v2983 = vperm.slane %v2975, %v2982
      %v2984 = vrot.slane %v2947, 4
      %v2985 = vsel %vm286, %v2984, %v2935
      %v2986 = vrot.slane %v2935, 4
      %v2987 = vsel %vm286, %v2947, %v2986
      %v2989 = vunpack.c.l.s4 1934713408
      %v2990 = vunpack.c.0.s8 %v2989
      %v2991 = vperm.slane %v2985, %v2990
      %v2993 = vunpack.c.l.s4 1934713408
      %v2994 = vunpack.c.0.s8 %v2993
      %v2995 = vperm.slane %v2987, %v2994
      %v2996 = vrot.slane %v2979, 4
      %v2997 = vsel %vm286, %v2996, %v2955
      %v2998 = vrot.slane %v2955, 4
      %v2999 = vsel %vm286, %v2979, %v2998
      %v3000 = vrot.slane %v2983, 4
      %v3001 = vsel %vm286, %v3000, %v2959
      %v3002 = vrot.slane %v2959, 4
      %v3003 = vsel %vm286, %v2983, %v3002
      %v3004 = vrot.slane %v2991, 4
      %v3005 = vsel %vm286, %v3004, %v2967
      %v3006 = vrot.slane %v2967, 4
      %v3007 = vsel %vm286, %v2991, %v3006
      %v3008 = vrot.slane %v2995, 4
      %v3009 = vsel %vm286, %v3008, %v2971
      %v3010 = vrot.slane %v2971, 4
      %v3011 = vsel %vm286, %v2995, %v3010
      %v3012 = vmul.f32 %v2885, 0.95
      %v3013 = vmul.f32 %v2887, 0.95
      %v3014 = vmul.f32 %v2889, 0.95
      %v3015 = vmul.f32 %v2891, 0.95
      %v3016 = vmul.f32 %v2893, 0.95
      %v3017 = vmul.f32 %v2895, 0.95
      %v3018 = vmul.f32 %v2897, 0.95
      %v3019 = vmul.f32 %v2899, 0.95
      %v3020 = vmul.f32 %v2997, 0.95
      %v3021 = vmul.f32 %v2999, 0.95
      %v3022 = vmul.f32 %v3001, 0.95
      %v3023 = vmul.f32 %v3003, 0.95
      %v3024 = vmul.f32 %v3005, 0.95
      %v3025 = vmul.f32 %v3007, 0.95
      %v3026 = vmul.f32 %v3009, 0.95
      %v3027 = vmul.f32 %v3011, 0.95
      %v3028 = vadd.f32 %v269, %v3012
      %v3029 = vadd.f32 %v270, %v3013
      %v3030 = vadd.f32 %v271, %v3014
      %v3031 = vadd.f32 %v272, %v3015
      %v3032 = vadd.f32 %v273, %v3016
      %v3033 = vadd.f32 %v274, %v3017
      %v3034 = vadd.f32 %v275, %v3018
      %v3035 = vadd.f32 %v276, %v3019
      %v3036 = vadd.f32 %v277, %v3020
      %v3037 = vadd.f32 %v278, %v3021
      %v3038 = vadd.f32 %v279, %v3022
      %v3039 = vadd.f32 %v280, %v3023
      %v3040 = vadd.f32 %v281, %v3024
      %v3041 = vadd.f32 %v282, %v3025
      %v3042 = vadd.f32 %v283, %v3026
      %v3043 = vadd.f32 %v284, %v3027
      %s3044 = scalar_lea.vmem %s3, 32
      %v3045 = vld [vmem:[%s3044] sm:$0xff]
      %v3046 = vld [vmem:[%s3044 + $0x8] sm:$0xff]
      %v3048 = vsel %vm566, %v3028, 0
      %v3051 = vsel %vm566, %v3029, 0
      %v3054 = vsel %vm566, %v3030, 0
      %v3057 = vsel %vm566, %v3031, 0
      %v3060 = vsel %vm566, %v3032, 0
      %v3063 = vsel %vm566, %v3033, 0
      %v3066 = vsel %vm566, %v3034, 0
      %v3069 = vsel %vm566, %v3035, 0
      %v3072 = vsel %vm566, %v3036, 0
      %v3075 = vsel %vm566, %v3037, 0
      %v3078 = vsel %vm566, %v3038, 0
      %v3081 = vsel %vm566, %v3039, 0
      %v3084 = vsel %vm566, %v3040, 0
      %v3087 = vsel %vm566, %v3041, 0
      %v3090 = vsel %vm566, %v3042, 0
      %v3093 = vsel %vm566, %v3043, 0
      %3095 = vmatpush.msra.mxu0 0.0
      %3096 = vmatpush.msra.mxu0 0.0
      %3097 = vmatpush.msra.mxu0 0.0
      %3098 = vmatpush.msra.mxu0 0.0
      %3099 = vmatpush.msra.mxu0 0.0
      %3100 = vmatpush.msra.mxu0 0.0
      %3101 = vmatpush.msra.mxu0 0.0
      %3102 = vmatpush.msra.mxu0 0.0
      %3103 = vmatpush.msra.mxu0 0.0
      %3104 = vmatpush.msra.mxu0 0.0
      %3105 = vmatpush.msra.mxu0 0.0
      %3106 = vmatpush.msra.mxu0 0.0
      %3107 = vmatpush.msra.mxu0 0.0
      %3108 = vmatpush.msra.mxu0 0.0
      %3109 = vmatpush.msra.mxu0 %v3046
      %3110 = vmatpush.msra.mxu0 %v3045
      %3111 = vmatmul.f32.gmra.mxu0 %v3048
      %v3112 = vpop.f32.mrf.mxu0
      %v3113 = vadd.f32 0.0, %v3112
      %3114 = vmatmul.f32.gmra.mxu0 %v3051
      %v3115 = vpop.f32.mrf.mxu0
      %v3116 = vadd.f32 0.0, %v3115
      %3117 = vmatmul.f32.gmra.mxu0 %v3054
      %v3118 = vpop.f32.mrf.mxu0
      %v3119 = vadd.f32 0.0, %v3118
      %3120 = vmatmul.f32.gmra.mxu0 %v3057
      %v3121 = vpop.f32.mrf.mxu0
      %v3122 = vadd.f32 0.0, %v3121
      %3123 = vmatmul.f32.gmra.mxu0 %v3060
      %v3124 = vpop.f32.mrf.mxu0
      %v3125 = vadd.f32 0.0, %v3124
      %3126 = vmatmul.f32.gmra.mxu0 %v3063
      %v3127 = vpop.f32.mrf.mxu0
      %v3128 = vadd.f32 0.0, %v3127
      %3129 = vmatmul.f32.gmra.mxu0 %v3066
      %v3130 = vpop.f32.mrf.mxu0
      %v3131 = vadd.f32 0.0, %v3130
      %3132 = vmatmul.f32.gmra.mxu0 %v3069
      %v3133 = vpop.f32.mrf.mxu0
      %v3134 = vadd.f32 0.0, %v3133
      %3135 = vmatmul.f32.gmra.mxu0 %v3072
      %v3136 = vpop.f32.mrf.mxu0
      %v3137 = vadd.f32 0.0, %v3136
      %3138 = vmatmul.f32.gmra.mxu0 %v3075
      %v3139 = vpop.f32.mrf.mxu0
      %v3140 = vadd.f32 0.0, %v3139
      %3141 = vmatmul.f32.gmra.mxu0 %v3078
      %v3142 = vpop.f32.mrf.mxu0
      %v3143 = vadd.f32 0.0, %v3142
      %3144 = vmatmul.f32.gmra.mxu0 %v3081
      %v3145 = vpop.f32.mrf.mxu0
      %v3146 = vadd.f32 0.0, %v3145
      %3147 = vmatmul.f32.gmra.mxu0 %v3084
      %v3148 = vpop.f32.mrf.mxu0
      %v3149 = vadd.f32 0.0, %v3148
      %3150 = vmatmul.f32.gmra.mxu0 %v3087
      %v3151 = vpop.f32.mrf.mxu0
      %v3152 = vadd.f32 0.0, %v3151
      %3153 = vmatmul.f32.gmra.mxu0 %v3090
      %v3154 = vpop.f32.mrf.mxu0
      %v3155 = vadd.f32 0.0, %v3154
      %3156 = vmatmul.f32.gmra.mxu0 %v3093
      %v3157 = vpop.f32.mrf.mxu0
      %v3158 = vadd.f32 0.0, %v3157
      %3159 = vdwg.mxu0
      %v3160 = vadd.f32 %v2411, %v3113
      %v3161 = vadd.f32 %v2412, %v3116
      %v3162 = vadd.f32 %v2413, %v3119
      %v3163 = vadd.f32 %v2414, %v3122
      %v3164 = vadd.f32 %v2415, %v3125
      %v3165 = vadd.f32 %v2416, %v3128
      %v3166 = vadd.f32 %v2417, %v3131
      %v3167 = vadd.f32 %v2418, %v3134
      %v3168 = vadd.f32 %v2419, %v3137
      %v3169 = vadd.f32 %v2420, %v3140
      %v3170 = vadd.f32 %v2421, %v3143
      %v3171 = vadd.f32 %v2422, %v3146
      %v3172 = vadd.f32 %v2423, %v3149
      %v3173 = vadd.f32 %v2424, %v3152
      %v3174 = vadd.f32 %v2425, %v3155
      %v3175 = vadd.f32 %v2426, %v3158
      %v3176 = vld [vmem:[%s4] sm:$0x1]
      %v3178 = vperm.slane %v3176, 0
      %v3180 = vadd.f32 %v3160, %v3178
      %v3181 = vadd.f32 %v3161, %v3178
      %v3182 = vadd.f32 %v3162, %v3178
      %v3183 = vadd.f32 %v3163, %v3178
      %v3184 = vadd.f32 %v3164, %v3178
      %v3185 = vadd.f32 %v3165, %v3178
      %v3186 = vadd.f32 %v3166, %v3178
      %v3187 = vadd.f32 %v3167, %v3178
      %v3188 = vadd.f32 %v3168, %v3178
      %v3189 = vadd.f32 %v3169, %v3178
      %v3190 = vadd.f32 %v3170, %v3178
      %v3191 = vadd.f32 %v3171, %v3178
      %v3192 = vadd.f32 %v3172, %v3178
      %v3193 = vadd.f32 %v3173, %v3178
      %v3194 = vadd.f32 %v3174, %v3178
      %v3195 = vadd.f32 %v3175, %v3178
      %3196 = vst [vmem:[%s244] sm:$0xff] %v3180
      %3197 = vst [vmem:[%s244 + $0x8] sm:$0xff] %v3181
      %3198 = vst [vmem:[%s244 + $0x10] sm:$0xff] %v3182
      %3199 = vst [vmem:[%s244 + $0x18] sm:$0xff] %v3183
      %3200 = vst [vmem:[%s244 + $0x20] sm:$0xff] %v3184
      %3201 = vst [vmem:[%s244 + $0x28] sm:$0xff] %v3185
      %3202 = vst [vmem:[%s244 + $0x30] sm:$0xff] %v3186
      %3203 = vst [vmem:[%s244 + $0x38] sm:$0xff] %v3187
      %3204 = vst [vmem:[%s244 + $0x40] sm:$0xff] %v3188
      %3205 = vst [vmem:[%s244 + $0x48] sm:$0xff] %v3189
      %3206 = vst [vmem:[%s244 + $0x50] sm:$0xff] %v3190
      %3207 = vst [vmem:[%s244 + $0x58] sm:$0xff] %v3191
      %3208 = vst [vmem:[%s244 + $0x60] sm:$0xff] %v3192
      %3209 = vst [vmem:[%s244 + $0x68] sm:$0xff] %v3193
      %3210 = vst [vmem:[%s244 + $0x70] sm:$0xff] %v3194
      %3211 = vst [vmem:[%s244 + $0x78] sm:$0xff] %v3195
      %p3212 = scmp.lt.s32.totalorder %s16, 1
      %s3213 = scalar_select %p3212, %s16, 1
      %s3214 = smul.addr %s3213, 16
      %s3215 = smul.addr %s3214, 8
      %s3216 = scalar_lea.vmem %s5, %s3215
      // Predicated region
      $region41: #{dy_mixprop_forward.1} parent=39 // pred_check
        %p3217 = pneg %p149
      $region42: #{dy_mixprop_forward.1} parent=39 // pred_check_branch
        %3219 = sbr.rel (%p3217) target = $region44
      $region43: #{dy_mixprop_forward.1} parent=39 // pred_region
        _
      $region44: #{dy_mixprop_forward.1} parent=39 // pred_fallthru
        _
    $region40: #{dy_mixprop_forward.1} parent=5 // pred_fallthru
      _
    %p3220 = scmp.le.s32.totalorder 2, %s11
    // Predicated region
    $region45: #{dy_mixprop_forward.1} parent=5 // pred_check
      %p3221 = pneg %p3220
    $region46: #{dy_mixprop_forward.1} parent=5 // pred_check_branch
      %3223 = sbr.rel (%p3221) target = $region48
    $region47: #{dy_mixprop_forward.1} parent=5 // pred_region
      %s3224 = ssub.s32 %s11, 2
      // Predicated region
      $region49: #{dy_mixprop_forward.1} parent=47 // pred_check
        %p3225 = pneg %p155
      $region50: #{dy_mixprop_forward.1} parent=47 // pred_check_branch
        %3227 = sbr.rel (%p3225) target = $region52
      $region51: #{dy_mixprop_forward.1} parent=47 // pred_region
        %p3228 = scmp.lt.s32.totalorder %s17, 1
        %s3229 = scalar_select %p3228, %s17, 1
        %s3230 = smul.addr %s3229, 16
        %s3231 = smul.addr %s3230, 8
        %s3232 = scalar_lea.vmem %s5, %s3231
      $region52: #{dy_mixprop_forward.1} parent=47 // pred_fallthru
        _
    $region48: #{dy_mixprop_forward.1} parent=5 // pred_fallthru
      _
  $region6: #{dy_mixprop_forward.1} parent=0 // loop_footer
    %s15 = sadd.s32 1, %s11
  $region7: #{dy_mixprop_forward.1} parent=0 // loop_footer_branch
    %10 = sbr.rel target = $region3
  $region8: #{dy_mixprop_forward.1} parent=0 // loop_exit
    _

</llo_original>
